<compile_context>
chip_gen: v5e
topology: v5e:2x2
jax: 0.10.0
libtpu: 0.0.40
codegen_flags: <defaults>
</compile_context>

<pallas_src>
import jax
import jax.numpy as jnp
from jax.experimental import pallas as pl
from jax.experimental.pallas import tpu as pltpu


# ------------------------------ fused kernel -------------------------------


def _vae_fused_kernel(
    x_ref, epsl_ref, epsg_ref,
    w1_ref, b1_ref, w2_ref, b2_ref, wmlv_ref, bmlv_ref,
    wg1_ref, bg1_ref, wg2_ref, bg2_ref, wgmlv_ref, bgmlv_ref,
    wl1_ref, bl1_ref, wl2_ref, bl2_ref,
    wd1_ref, bd1_ref, wd2_ref, bd2_ref,
    local_ref, global_ref, rec_ref,
    zpack_ref, llrows_ref,
):
    """Full VAE forward for one batch tile (TB sequences, all S timesteps)."""
    S, TB, D = x_ref.shape
    Ll = epsl_ref.shape[-1]
    Lg = epsg_ref.shape[-1]
    N = S * TB
    f32 = jnp.float32

    def mm(a, w_ref):
        # MXU matmul; operands in the weights' dtype (f32 or bf16), f32 accum.
        w = w_ref[...]
        return jnp.dot(a.astype(w.dtype), w, preferred_element_type=f32)

    # ---- Stage 1: local encoder + reparameterization, all S*TB rows at once.
    # (S, TB, D) -> (S*TB, D) is a free leading-dim collapse when TB % 8 == 0
    # (guaranteed by the wrapper).
    x2 = x_ref[...].reshape(N, D)
    h = jnp.maximum(mm(x2, w1_ref) + b1_ref[...], 0.0)
    # Dropout: identity (eval mode).
    h = jnp.maximum(mm(h, w2_ref) + b2_ref[...], 0.0)
    mlv = mm(h, wmlv_ref) + bmlv_ref[...]                 # (N, 2*Ll) = [mu|log_var]
    mu = mlv[:, :Ll]
    lv = mlv[:, Ll:]
    z = mu + epsl_ref[...].reshape(N, Ll) * jnp.exp(0.5 * lv)
    # Lane sub-slice stores into the fused output slab (no concat temporaries).
    local_ref[:, :, :2 * Ll] = mlv.reshape(S, TB, 2 * Ll)
    local_ref[:, :, 2 * Ll:] = z.reshape(S, TB, Ll)

    # ---- Lane-pack z into (TB, S*Ll) so ge1 is ONE matmul with K = S*Ll.
    z3 = z.reshape(S, TB, Ll)
    for s in range(S):                                    # static unroll, cheap stores
        zpack_ref[:, s * Ll:(s + 1) * Ll] = z3[s]

    # ---- Stage 2: global encoder + reparameterization.
    hg = jnp.maximum(mm(zpack_ref[...], wg1_ref) + bg1_ref[...], 0.0)
    hg = jnp.maximum(mm(hg, wg2_ref) + bg2_ref[...], 0.0)
    gmlv = mm(hg, wgmlv_ref) + bgmlv_ref[...]             # (TB, 2*Lg)
    gmu = gmlv[:, :Lg]
    glv = gmlv[:, Lg:]
    gz = gmu + epsg_ref[...] * jnp.exp(0.5 * glv)
    global_ref[:, :2 * Lg] = gmlv
    global_ref[:, 2 * Lg:] = gz

    # ---- Stage 3: global -> local latents (one wide matmul), batched decoder.
    h2 = jnp.maximum(mm(gz, wl1_ref) + bl1_ref[...], 0.0)
    ll_flat = mm(h2, wl2_ref) + bl2_ref[...]              # (TB, S*Ll)
    for s in range(S):                                    # lane-unpack -> rows
        llrows_ref[s] = ll_flat[:, s * Ll:(s + 1) * Ll]
    ll2 = llrows_ref[...].reshape(N, Ll)
    hd = jnp.maximum(mm(ll2, wd1_ref) + bd1_ref[...], 0.0)
    rec_ref[...] = (mm(hd, wd2_ref) + bd2_ref[...]).reshape(S, TB, D)


# ------------------------------ JAX wrapper --------------------------------


def _pad8(n):
    return ((n + 7) // 8) * 8


def _pad128(n):
    return ((n + 127) // 128) * 128


def _tile_bytes(shape, itemsize=4):
    """VMEM footprint of one buffer incl. (sublane, lane) padding."""
    if len(shape) == 1:
        return _pad128(shape[0]) * itemsize
    lead = 1
    for d in shape[:-2]:
        lead *= int(d)
    return lead * _pad8(shape[-2]) * _pad128(shape[-1]) * itemsize


def _resident_spec(arr):
    """Full-array block with a constant index_map: DMA'd once, VMEM-resident."""
    return pl.BlockSpec(arr.shape, lambda i: (0, 0))


def vae_forward(x, eps_local, eps_global, params, *, batch_tile=256,
                mxu_dtype=jnp.float32,
                vmem_budget_bytes=40 * 1024 * 1024):
    B, S, D = x.shape
    Ll = eps_local.shape[-1]
    Lg = eps_global.shape[-1]
    H = params["le1"][0].shape[-1]

    weight_shapes = [
        (D, H), (1, H), (H, H), (1, H), (H, 2 * Ll), (1, 2 * Ll),
        (S * Ll, H), (1, H), (H, H), (1, H), (H, 2 * Lg), (1, 2 * Lg),
        (Lg, H), (1, H), (H, S * Ll), (1, S * Ll),
        (Ll, H), (1, H), (H, D), (1, D),
    ]

    def vmem_estimate(tb):
        io = [(S, tb, D), (S, tb, Ll), (tb, Lg),              # inputs
              (S, tb, 3 * Ll), (tb, 3 * Lg), (S, tb, D)]      # outputs
        scr = [(tb, S * Ll), (S, tb, Ll)]
        est = 2 * sum(_tile_bytes(s) for s in io)             # double-buffered tiles
        est += 2 * sum(_tile_bytes(s) for s in weight_shapes) # resident weights
        est += sum(_tile_bytes(s) for s in scr)
        return est

    # --- batch tile: always a multiple of 8 (fills sublanes / MXU rows and
    # keeps every in-kernel leading-dim reshape tile-aligned), shrunk until the
    # lane-padding-aware VMEM estimate fits the (v7x-safe) budget.
    TB = max(8, (min(max(B, 8), batch_tile) // 8) * 8)
    while TB > 8 and vmem_estimate(TB) > vmem_budget_bytes:
        TB = max(8, ((TB // 2) // 8) * 8)
    grid_b = pl.cdiv(B, TB)
    Bp = grid_b * TB
    est = vmem_estimate(TB)
    vmem_limit = int(min(max(2 * est, 32 * 1024 * 1024), 64 * 1024 * 1024))

    # --- layout plumbing (cheap XLA, outside the kernel): timestep-major views
    # and zero-padding of the batch to a multiple of TB (zeros -> finite math).
    x_t = jnp.transpose(x, (1, 0, 2))                      # (S, B, D)
    epsl_t = jnp.transpose(eps_local, (1, 0, 2))           # (S, B, Ll)
    epsg = eps_global
    if Bp != B:
        pad = Bp - B
        x_t = jnp.pad(x_t, ((0, 0), (0, pad), (0, 0)))
        epsl_t = jnp.pad(epsl_t, ((0, 0), (0, pad), (0, 0)))
        epsg = jnp.pad(epsg, ((0, pad), (0, 0)))

    # --- weight prep: fused mu/log_var heads; matmul operands optionally bf16
    # (biases and all elementwise math stay f32).
    def cvt(w):
        return w.astype(mxu_dtype)

    w1, b1 = params["le1"]
    w2, b2 = params["le2"]
    wmlv = jnp.concatenate([params["lmu"][0], params["llv"][0]], axis=1)   # (H, 2*Ll)
    bmlv = jnp.concatenate([params["lmu"][1], params["llv"][1]], axis=1)
    wg1, bg1 = params["ge1"]
    wg2, bg2 = params["ge2"]
    wgmlv = jnp.concatenate([params["gmu"][0], params["glv"][0]], axis=1)  # (H, 2*Lg)
    bgmlv = jnp.concatenate([params["gmu"][1], params["glv"][1]], axis=1)
    wl1, bl1 = params["g2l1"]
    wl2, bl2 = params["g2l2"]
    wd1, bd1 = params["ld1"]
    wd2, bd2 = params["ld2"]

    weights = [cvt(w1), b1, cvt(w2), b2, cvt(wmlv), bmlv,
               cvt(wg1), bg1, cvt(wg2), bg2, cvt(wgmlv), bgmlv,
               cvt(wl1), bl1, cvt(wl2), bl2,
               cvt(wd1), bd1, cvt(wd2), bd2]

    in_specs = [
        pl.BlockSpec((S, TB, D), lambda i: (0, i, 0)),
        pl.BlockSpec((S, TB, Ll), lambda i: (0, i, 0)),
        pl.BlockSpec((TB, Lg), lambda i: (i, 0)),
    ] + [_resident_spec(w) for w in weights]

    out_shape = (
        jax.ShapeDtypeStruct((S, Bp, 3 * Ll), jnp.float32),  # [mu | log_var | z]
        jax.ShapeDtypeStruct((Bp, 3 * Lg), jnp.float32),     # [gmu | glog_var | gz]
        jax.ShapeDtypeStruct((S, Bp, D), jnp.float32),       # reconstruction (S-major)
    )
    out_specs = (
        pl.BlockSpec((S, TB, 3 * Ll), lambda i: (0, i, 0)),
        pl.BlockSpec((TB, 3 * Lg), lambda i: (i, 0)),
        pl.BlockSpec((S, TB, D), lambda i: (0, i, 0)),
    )
    scratch_shapes = [
        pltpu.VMEM((TB, S * Ll), jnp.float32),   # lane-packed z for ge1
        pltpu.VMEM((S, TB, Ll), jnp.float32),    # row-unpacked local latents
    ]

    N = Bp * S
    flops = 2 * (N * (D * H + H * H + 2 * H * Ll)            # local encoder + heads
                 + Bp * (S * Ll * H + H * H + 2 * H * Lg)    # global encoder + heads
                 + Bp * (Lg * H + H * S * Ll)                # global -> local
                 + N * (Ll * H + H * D))                     # decoder
    bytes_accessed = 4 * (Bp * S * (D + Ll) + Bp * Lg
                          + N * 3 * Ll + Bp * 3 * Lg + N * D) \
        + sum(int(w.size) * w.dtype.itemsize for w in weights)
    cost = pl.CostEstimate(flops=int(flops),
                           transcendentals=int(N * Ll + Bp * Lg),
                           bytes_accessed=int(bytes_accessed))

    local_slab, global_slab, rec_t = pl.pallas_call(
        _vae_fused_kernel,
        out_shape=out_shape,
        grid=(grid_b,),
        in_specs=in_specs,
        out_specs=out_specs,
        scratch_shapes=scratch_shapes,
        compiler_params=pltpu.CompilerParams(
            dimension_semantics=("parallel",),   # batch tiles -> both TCs on v7x
            vmem_limit_bytes=vmem_limit),
        cost_estimate=cost,
    )(x_t, epsl_t, epsg, *weights)

    local_slab = jnp.transpose(local_slab, (1, 0, 2))[:B]    # (B, S, 3*Ll)
    rec = jnp.transpose(rec_t, (1, 0, 2))[:B]                # (B, S, D)
    global_slab = global_slab[:B]
    return {
        "reconstruction": rec,
        "local_mu": local_slab[..., :Ll],
        "local_log_var": local_slab[..., Ll:2 * Ll],
        "local_z": local_slab[..., 2 * Ll:],
        "global_mu": global_slab[:, :Lg],
        "global_log_var": global_slab[:, Lg:2 * Lg],
        "global_z": global_slab[:, 2 * Lg:],
    }


# ------------------------- parameters / reference --------------------------


def init_params(key, D, H, Ll, Lg, S):
    def lin(k, fan_in, fan_out):
        kw, kb = jax.random.split(k)
        w = jax.random.normal(kw, (fan_in, fan_out), jnp.float32) / jnp.sqrt(
            jnp.float32(fan_in))
        b = jax.random.normal(kb, (1, fan_out), jnp.float32) * 0.01
        return w, b

    ks = jax.random.split(key, 12)
    return {
        "le1": lin(ks[0], D, H),
        "le2": lin(ks[1], H, H),
        "lmu": lin(ks[2], H, Ll),
        "llv": lin(ks[3], H, Ll),
        "ge1": lin(ks[4], Ll * S, H),
        "ge2": lin(ks[5], H, H),
        "gmu": lin(ks[6], H, Lg),
        "glv": lin(ks[7], H, Lg),
        "g2l1": lin(ks[8], Lg, H),
        "g2l2": lin(ks[9], H, Ll * S),
        "ld1": lin(ks[10], Ll, H),
        "ld2": lin(ks[11], H, D),
    }


def vae_forward_ref(x, eps_local, eps_global, params):
    """Pure-JAX reference mirroring the PyTorch forward (eval-mode dropout)."""
    B, S, D = x.shape
    Ll = eps_local.shape[-1]

    def lin(h, p):
        return h @ p[0] + p[1]

    h = jax.nn.relu(lin(x.reshape(B * S, D), params["le1"]))
    h = jax.nn.relu(lin(h, params["le2"]))
    lmu = lin(h, params["lmu"])
    llv = lin(h, params["llv"])
    lz = lmu + eps_local.reshape(B * S, Ll) * jnp.exp(0.5 * llv)

    h = jax.nn.relu(lin(lz.reshape(B, S * Ll), params["ge1"]))
    h = jax.nn.relu(lin(h, params["ge2"]))
    gmu = lin(h, params["gmu"])
    glv = lin(h, params["glv"])
    gz = gmu + eps_global * jnp.exp(0.5 * glv)

    h = jax.nn.relu(lin(gz, params["g2l1"]))
    llf = lin(h, params["g2l2"])
    h = jax.nn.relu(lin(llf.reshape(B * S, Ll), params["ld1"]))
    x_rec = lin(h, params["ld2"]).reshape(B, S, D)

    return {
        "reconstruction": x_rec,
        "local_mu": lmu.reshape(B, S, Ll),
        "local_log_var": llv.reshape(B, S, Ll),
        "local_z": lz.reshape(B, S, Ll),
        "global_mu": gmu,
        "global_log_var": glv,
        "global_z": gz,
    }


# ---------------------------------- main -----------------------------------

if __name__ == "__main__":
    # Small, module-consistent shapes.  B=20 with batch_tile=8 exercises a
    # multi-step grid (grid=3) plus zero-padding of the last batch tile.
    B, S, D = 20, 8, 4          # batch, sequence_length, input_dim
    H, Ll, Lg = 32, 8, 16       # hidden_dim, local_latent_dim, global_latent_dim

    root = jax.random.PRNGKey(0)
    k_params, k_x, k_el, k_eg = jax.random.split(root, 4)

    params = init_params(k_params, D, H, Ll, Lg, S)
    x = jax.random.normal(k_x, (B, S, D), jnp.float32)
    eps_local = jax.random.normal(k_el, (B, S, Ll), jnp.float32)
    eps_global = jax.random.normal(k_eg, (B, Lg), jnp.float32)

    # f32 MXU operands: bit-tight check against the pure-JAX reference.
    fwd = jax.jit(lambda *a: vae_forward(*a, batch_tile=8))
    out = fwd(x, eps_local, eps_global, params)
    out = jax.tree_util.tree_map(jax.block_until_ready, out)

    ref = vae_forward_ref(x, eps_local, eps_global, params)
    for k in ref:
        assert out[k].shape == ref[k].shape, (k, out[k].shape, ref[k].shape)
        err = float(jnp.max(jnp.abs(out[k] - ref[k])))
        assert err < 5e-4, (k, err)

    # bf16 MXU-operand path (v6e/v7x recommendation): structural/finiteness
    # check only (looser numerics by design).
    fwd_bf16 = jax.jit(
        lambda *a: vae_forward(*a, batch_tile=8, mxu_dtype=jnp.bfloat16))
    out16 = fwd_bf16(x, eps_local, eps_global, params)
    out16 = jax.tree_util.tree_map(jax.block_until_ready, out16)
    for k in ref:
        assert out16[k].shape == ref[k].shape, (k, out16[k].shape, ref[k].shape)
        assert bool(jnp.all(jnp.isfinite(out16[k]))), k

    print("KERNEL_OK")
</pallas_src>

<mosaic_0001>
module attributes {stable_mosaic.version = 11 : i64} {
  func.func @_vae_fused_kernel(%arg0: i32, %arg1: memref<8x8x4xf32, #tpu.memory_space<vmem>>, %arg2: memref<8x8x8xf32, #tpu.memory_space<vmem>>, %arg3: memref<8x16xf32, #tpu.memory_space<vmem>>, %arg4: memref<4x32xf32, #tpu.memory_space<vmem>>, %arg5: memref<1x32xf32, #tpu.memory_space<vmem>>, %arg6: memref<32x32xf32, #tpu.memory_space<vmem>>, %arg7: memref<1x32xf32, #tpu.memory_space<vmem>>, %arg8: memref<32x16xf32, #tpu.memory_space<vmem>>, %arg9: memref<1x16xf32, #tpu.memory_space<vmem>>, %arg10: memref<64x32xf32, #tpu.memory_space<vmem>>, %arg11: memref<1x32xf32, #tpu.memory_space<vmem>>, %arg12: memref<32x32xf32, #tpu.memory_space<vmem>>, %arg13: memref<1x32xf32, #tpu.memory_space<vmem>>, %arg14: memref<32x32xf32, #tpu.memory_space<vmem>>, %arg15: memref<1x32xf32, #tpu.memory_space<vmem>>, %arg16: memref<16x32xf32, #tpu.memory_space<vmem>>, %arg17: memref<1x32xf32, #tpu.memory_space<vmem>>, %arg18: memref<32x64xf32, #tpu.memory_space<vmem>>, %arg19: memref<1x64xf32, #tpu.memory_space<vmem>>, %arg20: memref<8x32xf32, #tpu.memory_space<vmem>>, %arg21: memref<1x32xf32, #tpu.memory_space<vmem>>, %arg22: memref<32x4xf32, #tpu.memory_space<vmem>>, %arg23: memref<1x4xf32, #tpu.memory_space<vmem>>, %arg24: memref<8x8x24xf32, #tpu.memory_space<vmem>>, %arg25: memref<8x48xf32, #tpu.memory_space<vmem>>, %arg26: memref<8x8x4xf32, #tpu.memory_space<vmem>>, %arg27: memref<8x64xf32, #tpu.memory_space<vmem>>, %arg28: memref<8x8x8xf32, #tpu.memory_space<vmem>>) attributes {dimension_semantics = [#tpu.dimension_semantics<parallel>], iteration_bounds = array<i64: 3>, scalar_prefetch = 0 : i64, scratch_operands = 2 : i64, tpu.core_type = #tpu.core_type<tc>, window_params = [{transform_indices = @transform_0, window_bounds = array<i64: 8, 8, 4>}, {transform_indices = @transform_1, window_bounds = array<i64: 8, 8, 8>}, {transform_indices = @transform_2, window_bounds = array<i64: 8, 16>}, {pipeline_mode = #tpu.pipeline_mode<synchronous>, transform_indices = @transform_3, window_bounds = array<i64: 4, 32>}, {pipeline_mode = #tpu.pipeline_mode<synchronous>, transform_indices = @transform_4, window_bounds = array<i64: 1, 32>}, {pipeline_mode = #tpu.pipeline_mode<synchronous>, transform_indices = @transform_5, window_bounds = array<i64: 32, 32>}, {pipeline_mode = #tpu.pipeline_mode<synchronous>, transform_indices = @transform_6, window_bounds = array<i64: 1, 32>}, {pipeline_mode = #tpu.pipeline_mode<synchronous>, transform_indices = @transform_7, window_bounds = array<i64: 32, 16>}, {pipeline_mode = #tpu.pipeline_mode<synchronous>, transform_indices = @transform_8, window_bounds = array<i64: 1, 16>}, {pipeline_mode = #tpu.pipeline_mode<synchronous>, transform_indices = @transform_9, window_bounds = array<i64: 64, 32>}, {pipeline_mode = #tpu.pipeline_mode<synchronous>, transform_indices = @transform_10, window_bounds = array<i64: 1, 32>}, {pipeline_mode = #tpu.pipeline_mode<synchronous>, transform_indices = @transform_11, window_bounds = array<i64: 32, 32>}, {pipeline_mode = #tpu.pipeline_mode<synchronous>, transform_indices = @transform_12, window_bounds = array<i64: 1, 32>}, {pipeline_mode = #tpu.pipeline_mode<synchronous>, transform_indices = @transform_13, window_bounds = array<i64: 32, 32>}, {pipeline_mode = #tpu.pipeline_mode<synchronous>, transform_indices = @transform_14, window_bounds = array<i64: 1, 32>}, {pipeline_mode = #tpu.pipeline_mode<synchronous>, transform_indices = @transform_15, window_bounds = array<i64: 16, 32>}, {pipeline_mode = #tpu.pipeline_mode<synchronous>, transform_indices = @transform_16, window_bounds = array<i64: 1, 32>}, {pipeline_mode = #tpu.pipeline_mode<synchronous>, transform_indices = @transform_17, window_bounds = array<i64: 32, 64>}, {pipeline_mode = #tpu.pipeline_mode<synchronous>, transform_indices = @transform_18, window_bounds = array<i64: 1, 64>}, {pipeline_mode = #tpu.pipeline_mode<synchronous>, transform_indices = @transform_19, window_bounds = array<i64: 8, 32>}, {pipeline_mode = #tpu.pipeline_mode<synchronous>, transform_indices = @transform_20, window_bounds = array<i64: 1, 32>}, {pipeline_mode = #tpu.pipeline_mode<synchronous>, transform_indices = @transform_21, window_bounds = array<i64: 32, 4>}, {pipeline_mode = #tpu.pipeline_mode<synchronous>, transform_indices = @transform_22, window_bounds = array<i64: 1, 4>}, {transform_indices = @transform_23, window_bounds = array<i64: 8, 8, 24>}, {transform_indices = @transform_24, window_bounds = array<i64: 8, 48>}, {transform_indices = @transform_25, window_bounds = array<i64: 8, 8, 4>}]} {
    %c0 = arith.constant 0 : index
    %c0_0 = arith.constant 0 : index
    %c0_1 = arith.constant 0 : index
    %0 = vector.load %arg1[%c0, %c0_0, %c0_1] : memref<8x8x4xf32, #tpu.memory_space<vmem>>, vector<8x8x4xf32>
    %1 = vector.shape_cast %0 : vector<8x8x4xf32> to vector<64x4xf32>
    %c0_2 = arith.constant 0 : index
    %c0_3 = arith.constant 0 : index
    %2 = vector.load %arg4[%c0_2, %c0_3] : memref<4x32xf32, #tpu.memory_space<vmem>>, vector<4x32xf32>
    %cst = arith.constant dense<0.000000e+00> : vector<64x32xf32>
    %3 = tpu.matmul %1, %2, %cst {dimension_numbers = #tpu.dot_dimension_numbers<[1], [0], [0], [1], [0, 0, 1, 1], [], []>} : vector<64x4xf32>, vector<4x32xf32>, vector<64x32xf32> -> vector<64x32xf32>
    %c0_4 = arith.constant 0 : index
    %c0_5 = arith.constant 0 : index
    %4 = vector.load %arg5[%c0_4, %c0_5] : memref<1x32xf32, #tpu.memory_space<vmem>>, vector<1x32xf32>
    %5 = vector.broadcast %4 : vector<1x32xf32> to vector<64x32xf32>
    %6 = arith.addf %3, %5 : vector<64x32xf32>
    %cst_6 = arith.constant 0.000000e+00 : f32
    %7 = vector.broadcast %cst_6 : f32 to vector<64x32xf32>
    %8 = arith.maximumf %6, %7 : vector<64x32xf32>
    %c0_7 = arith.constant 0 : index
    %c0_8 = arith.constant 0 : index
    %9 = vector.load %arg6[%c0_7, %c0_8] : memref<32x32xf32, #tpu.memory_space<vmem>>, vector<32x32xf32>
    %cst_9 = arith.constant dense<0.000000e+00> : vector<64x32xf32>
    %10 = tpu.matmul %8, %9, %cst_9 {dimension_numbers = #tpu.dot_dimension_numbers<[1], [0], [0], [1], [0, 0, 1, 1], [], []>} : vector<64x32xf32>, vector<32x32xf32>, vector<64x32xf32> -> vector<64x32xf32>
    %c0_10 = arith.constant 0 : index
    %c0_11 = arith.constant 0 : index
    %11 = vector.load %arg7[%c0_10, %c0_11] : memref<1x32xf32, #tpu.memory_space<vmem>>, vector<1x32xf32>
    %12 = vector.broadcast %11 : vector<1x32xf32> to vector<64x32xf32>
    %13 = arith.addf %10, %12 : vector<64x32xf32>
    %cst_12 = arith.constant 0.000000e+00 : f32
    %14 = vector.broadcast %cst_12 : f32 to vector<64x32xf32>
    %15 = arith.maximumf %13, %14 : vector<64x32xf32>
    %c0_13 = arith.constant 0 : index
    %c0_14 = arith.constant 0 : index
    %16 = vector.load %arg8[%c0_13, %c0_14] : memref<32x16xf32, #tpu.memory_space<vmem>>, vector<32x16xf32>
    %cst_15 = arith.constant dense<0.000000e+00> : vector<64x16xf32>
    %17 = tpu.matmul %15, %16, %cst_15 {dimension_numbers = #tpu.dot_dimension_numbers<[1], [0], [0], [1], [0, 0, 1, 1], [], []>} : vector<64x32xf32>, vector<32x16xf32>, vector<64x16xf32> -> vector<64x16xf32>
    %c0_16 = arith.constant 0 : index
    %c0_17 = arith.constant 0 : index
    %18 = vector.load %arg9[%c0_16, %c0_17] : memref<1x16xf32, #tpu.memory_space<vmem>>, vector<1x16xf32>
    %19 = vector.broadcast %18 : vector<1x16xf32> to vector<64x16xf32>
    %20 = arith.addf %17, %19 : vector<64x16xf32>
    %21 = vector.extract_strided_slice %20 {offsets = [0, 0], sizes = [64, 8], strides = [1, 1]} : vector<64x16xf32> to vector<64x8xf32>
    %22 = vector.extract_strided_slice %20 {offsets = [0, 8], sizes = [64, 8], strides = [1, 1]} : vector<64x16xf32> to vector<64x8xf32>
    %c0_18 = arith.constant 0 : index
    %c0_19 = arith.constant 0 : index
    %c0_20 = arith.constant 0 : index
    %23 = vector.load %arg2[%c0_18, %c0_19, %c0_20] : memref<8x8x8xf32, #tpu.memory_space<vmem>>, vector<8x8x8xf32>
    %24 = vector.shape_cast %23 : vector<8x8x8xf32> to vector<64x8xf32>
    %cst_21 = arith.constant 5.000000e-01 : f32
    %25 = vector.broadcast %cst_21 : f32 to vector<64x8xf32>
    %26 = arith.mulf %25, %22 : vector<64x8xf32>
    %27 = math.exp %26 : vector<64x8xf32>
    %28 = arith.mulf %24, %27 : vector<64x8xf32>
    %29 = arith.addf %21, %28 : vector<64x8xf32>
    %30 = vector.shape_cast %20 : vector<64x16xf32> to vector<8x8x16xf32>
    %c0_22 = arith.constant 0 : index
    %c0_23 = arith.constant 0 : index
    %c0_24 = arith.constant 0 : index
    %31 = vector.load %arg24[%c0_22, %c0_23, %c0_24] : memref<8x8x24xf32, #tpu.memory_space<vmem>>, vector<8x8x16xf32>
    tpu.vector_store %arg24[%c0_22, %c0_23, %c0_24], %30 {strides = array<i32>} : memref<8x8x24xf32, #tpu.memory_space<vmem>>, vector<8x8x16xf32>,
    %32 = vector.shape_cast %29 : vector<64x8xf32> to vector<8x8x8xf32>
    %c0_25 = arith.constant 0 : index
    %c0_26 = arith.constant 0 : index
    %c16 = arith.constant 16 : index
    %33 = vector.load %arg24[%c0_25, %c0_26, %c16] : memref<8x8x24xf32, #tpu.memory_space<vmem>>, vector<8x8x8xf32>
    tpu.vector_store %arg24[%c0_25, %c0_26, %c16], %32 {strides = array<i32>} : memref<8x8x24xf32, #tpu.memory_space<vmem>>, vector<8x8x8xf32>,
    %34 = vector.shape_cast %29 : vector<64x8xf32> to vector<8x8x8xf32>
    %35 = vector.extract_strided_slice %34 {offsets = [0, 0, 0], sizes = [1, 8, 8], strides = [1, 1, 1]} : vector<8x8x8xf32> to vector<1x8x8xf32>
    %36 = vector.shape_cast %35 : vector<1x8x8xf32> to vector<8x8xf32>
    %c0_27 = arith.constant 0 : index
    %c0_28 = arith.constant 0 : index
    %37 = vector.load %arg27[%c0_27, %c0_28] : memref<8x64xf32, #tpu.memory_space<vmem>>, vector<8x8xf32>
    tpu.vector_store %arg27[%c0_27, %c0_28], %36 {strides = array<i32>} : memref<8x64xf32, #tpu.memory_space<vmem>>, vector<8x8xf32>,
    %38 = vector.extract_strided_slice %34 {offsets = [1, 0, 0], sizes = [1, 8, 8], strides = [1, 1, 1]} : vector<8x8x8xf32> to vector<1x8x8xf32>
    %39 = vector.shape_cast %38 : vector<1x8x8xf32> to vector<8x8xf32>
    %c0_29 = arith.constant 0 : index
    %c8 = arith.constant 8 : index
    %40 = vector.load %arg27[%c0_29, %c8] : memref<8x64xf32, #tpu.memory_space<vmem>>, vector<8x8xf32>
    tpu.vector_store %arg27[%c0_29, %c8], %39 {strides = array<i32>} : memref<8x64xf32, #tpu.memory_space<vmem>>, vector<8x8xf32>,
    %41 = vector.extract_strided_slice %34 {offsets = [2, 0, 0], sizes = [1, 8, 8], strides = [1, 1, 1]} : vector<8x8x8xf32> to vector<1x8x8xf32>
    %42 = vector.shape_cast %41 : vector<1x8x8xf32> to vector<8x8xf32>
    %c0_30 = arith.constant 0 : index
    %c16_31 = arith.constant 16 : index
    %43 = vector.load %arg27[%c0_30, %c16_31] : memref<8x64xf32, #tpu.memory_space<vmem>>, vector<8x8xf32>
    tpu.vector_store %arg27[%c0_30, %c16_31], %42 {strides = array<i32>} : memref<8x64xf32, #tpu.memory_space<vmem>>, vector<8x8xf32>,
    %44 = vector.extract_strided_slice %34 {offsets = [3, 0, 0], sizes = [1, 8, 8], strides = [1, 1, 1]} : vector<8x8x8xf32> to vector<1x8x8xf32>
    %45 = vector.shape_cast %44 : vector<1x8x8xf32> to vector<8x8xf32>
    %c0_32 = arith.constant 0 : index
    %c24 = arith.constant 24 : index
    %46 = vector.load %arg27[%c0_32, %c24] : memref<8x64xf32, #tpu.memory_space<vmem>>, vector<8x8xf32>
    tpu.vector_store %arg27[%c0_32, %c24], %45 {strides = array<i32>} : memref<8x64xf32, #tpu.memory_space<vmem>>, vector<8x8xf32>,
    %47 = vector.extract_strided_slice %34 {offsets = [4, 0, 0], sizes = [1, 8, 8], strides = [1, 1, 1]} : vector<8x8x8xf32> to vector<1x8x8xf32>
    %48 = vector.shape_cast %47 : vector<1x8x8xf32> to vector<8x8xf32>
    %c0_33 = arith.constant 0 : index
    %c32 = arith.constant 32 : index
    %49 = vector.load %arg27[%c0_33, %c32] : memref<8x64xf32, #tpu.memory_space<vmem>>, vector<8x8xf32>
    tpu.vector_store %arg27[%c0_33, %c32], %48 {strides = array<i32>} : memref<8x64xf32, #tpu.memory_space<vmem>>, vector<8x8xf32>,
    %50 = vector.extract_strided_slice %34 {offsets = [5, 0, 0], sizes = [1, 8, 8], strides = [1, 1, 1]} : vector<8x8x8xf32> to vector<1x8x8xf32>
    %51 = vector.shape_cast %50 : vector<1x8x8xf32> to vector<8x8xf32>
    %c0_34 = arith.constant 0 : index
    %c40 = arith.constant 40 : index
    %52 = vector.load %arg27[%c0_34, %c40] : memref<8x64xf32, #tpu.memory_space<vmem>>, vector<8x8xf32>
    tpu.vector_store %arg27[%c0_34, %c40], %51 {strides = array<i32>} : memref<8x64xf32, #tpu.memory_space<vmem>>, vector<8x8xf32>,
    %53 = vector.extract_strided_slice %34 {offsets = [6, 0, 0], sizes = [1, 8, 8], strides = [1, 1, 1]} : vector<8x8x8xf32> to vector<1x8x8xf32>
    %54 = vector.shape_cast %53 : vector<1x8x8xf32> to vector<8x8xf32>
    %c0_35 = arith.constant 0 : index
    %c48 = arith.constant 48 : index
    %55 = vector.load %arg27[%c0_35, %c48] : memref<8x64xf32, #tpu.memory_space<vmem>>, vector<8x8xf32>
    tpu.vector_store %arg27[%c0_35, %c48], %54 {strides = array<i32>} : memref<8x64xf32, #tpu.memory_space<vmem>>, vector<8x8xf32>,
    %56 = vector.extract_strided_slice %34 {offsets = [7, 0, 0], sizes = [1, 8, 8], strides = [1, 1, 1]} : vector<8x8x8xf32> to vector<1x8x8xf32>
    %57 = vector.shape_cast %56 : vector<1x8x8xf32> to vector<8x8xf32>
    %c0_36 = arith.constant 0 : index
    %c56 = arith.constant 56 : index
    %58 = vector.load %arg27[%c0_36, %c56] : memref<8x64xf32, #tpu.memory_space<vmem>>, vector<8x8xf32>
    tpu.vector_store %arg27[%c0_36, %c56], %57 {strides = array<i32>} : memref<8x64xf32, #tpu.memory_space<vmem>>, vector<8x8xf32>,
    %c0_37 = arith.constant 0 : index
    %c0_38 = arith.constant 0 : index
    %59 = vector.load %arg27[%c0_37, %c0_38] : memref<8x64xf32, #tpu.memory_space<vmem>>, vector<8x64xf32>
    %c0_39 = arith.constant 0 : index
    %c0_40 = arith.constant 0 : index
    %60 = vector.load %arg10[%c0_39, %c0_40] : memref<64x32xf32, #tpu.memory_space<vmem>>, vector<64x32xf32>
    %cst_41 = arith.constant dense<0.000000e+00> : vector<8x32xf32>
    %61 = tpu.matmul %59, %60, %cst_41 {dimension_numbers = #tpu.dot_dimension_numbers<[1], [0], [0], [1], [0, 0, 1, 1], [], []>} : vector<8x64xf32>, vector<64x32xf32>, vector<8x32xf32> -> vector<8x32xf32>
    %c0_42 = arith.constant 0 : index
    %c0_43 = arith.constant 0 : index
    %62 = vector.load %arg11[%c0_42, %c0_43] : memref<1x32xf32, #tpu.memory_space<vmem>>, vector<1x32xf32>
    %63 = vector.broadcast %62 : vector<1x32xf32> to vector<8x32xf32>
    %64 = arith.addf %61, %63 : vector<8x32xf32>
    %cst_44 = arith.constant 0.000000e+00 : f32
    %65 = vector.broadcast %cst_44 : f32 to vector<8x32xf32>
    %66 = arith.maximumf %64, %65 : vector<8x32xf32>
    %c0_45 = arith.constant 0 : index
    %c0_46 = arith.constant 0 : index
    %67 = vector.load %arg12[%c0_45, %c0_46] : memref<32x32xf32, #tpu.memory_space<vmem>>, vector<32x32xf32>
    %cst_47 = arith.constant dense<0.000000e+00> : vector<8x32xf32>
    %68 = tpu.matmul %66, %67, %cst_47 {dimension_numbers = #tpu.dot_dimension_numbers<[1], [0], [0], [1], [0, 0, 1, 1], [], []>} : vector<8x32xf32>, vector<32x32xf32>, vector<8x32xf32> -> vector<8x32xf32>
    %c0_48 = arith.constant 0 : index
    %c0_49 = arith.constant 0 : index
    %69 = vector.load %arg13[%c0_48, %c0_49] : memref<1x32xf32, #tpu.memory_space<vmem>>, vector<1x32xf32>
    %70 = vector.broadcast %69 : vector<1x32xf32> to vector<8x32xf32>
    %71 = arith.addf %68, %70 : vector<8x32xf32>
    %cst_50 = arith.constant 0.000000e+00 : f32
    %72 = vector.broadcast %cst_50 : f32 to vector<8x32xf32>
    %73 = arith.maximumf %71, %72 : vector<8x32xf32>
    %c0_51 = arith.constant 0 : index
    %c0_52 = arith.constant 0 : index
    %74 = vector.load %arg14[%c0_51, %c0_52] : memref<32x32xf32, #tpu.memory_space<vmem>>, vector<32x32xf32>
    %cst_53 = arith.constant dense<0.000000e+00> : vector<8x32xf32>
    %75 = tpu.matmul %73, %74, %cst_53 {dimension_numbers = #tpu.dot_dimension_numbers<[1], [0], [0], [1], [0, 0, 1, 1], [], []>} : vector<8x32xf32>, vector<32x32xf32>, vector<8x32xf32> -> vector<8x32xf32>
    %c0_54 = arith.constant 0 : index
    %c0_55 = arith.constant 0 : index
    %76 = vector.load %arg15[%c0_54, %c0_55] : memref<1x32xf32, #tpu.memory_space<vmem>>, vector<1x32xf32>
    %77 = vector.broadcast %76 : vector<1x32xf32> to vector<8x32xf32>
    %78 = arith.addf %75, %77 : vector<8x32xf32>
    %79 = vector.extract_strided_slice %78 {offsets = [0, 0], sizes = [8, 16], strides = [1, 1]} : vector<8x32xf32> to vector<8x16xf32>
    %80 = vector.extract_strided_slice %78 {offsets = [0, 16], sizes = [8, 16], strides = [1, 1]} : vector<8x32xf32> to vector<8x16xf32>
    %c0_56 = arith.constant 0 : index
    %c0_57 = arith.constant 0 : index
    %81 = vector.load %arg3[%c0_56, %c0_57] : memref<8x16xf32, #tpu.memory_space<vmem>>, vector<8x16xf32>
    %cst_58 = arith.constant 5.000000e-01 : f32
    %82 = vector.broadcast %cst_58 : f32 to vector<8x16xf32>
    %83 = arith.mulf %82, %80 : vector<8x16xf32>
    %84 = math.exp %83 : vector<8x16xf32>
    %85 = arith.mulf %81, %84 : vector<8x16xf32>
    %86 = arith.addf %79, %85 : vector<8x16xf32>
    %c0_59 = arith.constant 0 : index
    %c0_60 = arith.constant 0 : index
    %87 = vector.load %arg25[%c0_59, %c0_60] : memref<8x48xf32, #tpu.memory_space<vmem>>, vector<8x32xf32>
    tpu.vector_store %arg25[%c0_59, %c0_60], %78 {strides = array<i32>} : memref<8x48xf32, #tpu.memory_space<vmem>>, vector<8x32xf32>,
    %c0_61 = arith.constant 0 : index
    %c32_62 = arith.constant 32 : index
    %88 = vector.load %arg25[%c0_61, %c32_62] : memref<8x48xf32, #tpu.memory_space<vmem>>, vector<8x16xf32>
    tpu.vector_store %arg25[%c0_61, %c32_62], %86 {strides = array<i32>} : memref<8x48xf32, #tpu.memory_space<vmem>>, vector<8x16xf32>,
    %c0_63 = arith.constant 0 : index
    %c0_64 = arith.constant 0 : index
    %89 = vector.load %arg16[%c0_63, %c0_64] : memref<16x32xf32, #tpu.memory_space<vmem>>, vector<16x32xf32>
    %cst_65 = arith.constant dense<0.000000e+00> : vector<8x32xf32>
    %90 = tpu.matmul %86, %89, %cst_65 {dimension_numbers = #tpu.dot_dimension_numbers<[1], [0], [0], [1], [0, 0, 1, 1], [], []>} : vector<8x16xf32>, vector<16x32xf32>, vector<8x32xf32> -> vector<8x32xf32>
    %c0_66 = arith.constant 0 : index
    %c0_67 = arith.constant 0 : index
    %91 = vector.load %arg17[%c0_66, %c0_67] : memref<1x32xf32, #tpu.memory_space<vmem>>, vector<1x32xf32>
    %92 = vector.broadcast %91 : vector<1x32xf32> to vector<8x32xf32>
    %93 = arith.addf %90, %92 : vector<8x32xf32>
    %cst_68 = arith.constant 0.000000e+00 : f32
    %94 = vector.broadcast %cst_68 : f32 to vector<8x32xf32>
    %95 = arith.maximumf %93, %94 : vector<8x32xf32>
    %c0_69 = arith.constant 0 : index
    %c0_70 = arith.constant 0 : index
    %96 = vector.load %arg18[%c0_69, %c0_70] : memref<32x64xf32, #tpu.memory_space<vmem>>, vector<32x64xf32>
    %cst_71 = arith.constant dense<0.000000e+00> : vector<8x64xf32>
    %97 = tpu.matmul %95, %96, %cst_71 {dimension_numbers = #tpu.dot_dimension_numbers<[1], [0], [0], [1], [0, 0, 1, 1], [], []>} : vector<8x32xf32>, vector<32x64xf32>, vector<8x64xf32> -> vector<8x64xf32>
    %c0_72 = arith.constant 0 : index
    %c0_73 = arith.constant 0 : index
    %98 = vector.load %arg19[%c0_72, %c0_73] : memref<1x64xf32, #tpu.memory_space<vmem>>, vector<1x64xf32>
    %99 = vector.broadcast %98 : vector<1x64xf32> to vector<8x64xf32>
    %100 = arith.addf %97, %99 : vector<8x64xf32>
    %101 = vector.extract_strided_slice %100 {offsets = [0, 0], sizes = [8, 8], strides = [1, 1]} : vector<8x64xf32> to vector<8x8xf32>
    %c0_74 = arith.constant 0 : index
    %c0_75 = arith.constant 0 : index
    %c0_76 = arith.constant 0 : index
    %102 = vector.load %arg28[%c0_74, %c0_75, %c0_76] : memref<8x8x8xf32, #tpu.memory_space<vmem>>, vector<1x8x8xf32>
    %103 = vector.shape_cast %102 : vector<1x8x8xf32> to vector<8x8xf32>
    %104 = vector.shape_cast %101 : vector<8x8xf32> to vector<1x8x8xf32>
    tpu.vector_store %arg28[%c0_74, %c0_75, %c0_76], %104 {strides = array<i32>} : memref<8x8x8xf32, #tpu.memory_space<vmem>>, vector<1x8x8xf32>,
    %105 = vector.extract_strided_slice %100 {offsets = [0, 8], sizes = [8, 8], strides = [1, 1]} : vector<8x64xf32> to vector<8x8xf32>
    %c1 = arith.constant 1 : index
    %c0_77 = arith.constant 0 : index
    %c0_78 = arith.constant 0 : index
    %106 = vector.load %arg28[%c1, %c0_77, %c0_78] : memref<8x8x8xf32, #tpu.memory_space<vmem>>, vector<1x8x8xf32>
    %107 = vector.shape_cast %106 : vector<1x8x8xf32> to vector<8x8xf32>
    %108 = vector.shape_cast %105 : vector<8x8xf32> to vector<1x8x8xf32>
    tpu.vector_store %arg28[%c1, %c0_77, %c0_78], %108 {strides = array<i32>} : memref<8x8x8xf32, #tpu.memory_space<vmem>>, vector<1x8x8xf32>,
    %109 = vector.extract_strided_slice %100 {offsets = [0, 16], sizes = [8, 8], strides = [1, 1]} : vector<8x64xf32> to vector<8x8xf32>
    %c2 = arith.constant 2 : index
    %c0_79 = arith.constant 0 : index
    %c0_80 = arith.constant 0 : index
    %110 = vector.load %arg28[%c2, %c0_79, %c0_80] : memref<8x8x8xf32, #tpu.memory_space<vmem>>, vector<1x8x8xf32>
    %111 = vector.shape_cast %110 : vector<1x8x8xf32> to vector<8x8xf32>
    %112 = vector.shape_cast %109 : vector<8x8xf32> to vector<1x8x8xf32>
    tpu.vector_store %arg28[%c2, %c0_79, %c0_80], %112 {strides = array<i32>} : memref<8x8x8xf32, #tpu.memory_space<vmem>>, vector<1x8x8xf32>,
    %113 = vector.extract_strided_slice %100 {offsets = [0, 24], sizes = [8, 8], strides = [1, 1]} : vector<8x64xf32> to vector<8x8xf32>
    %c3 = arith.constant 3 : index
    %c0_81 = arith.constant 0 : index
    %c0_82 = arith.constant 0 : index
    %114 = vector.load %arg28[%c3, %c0_81, %c0_82] : memref<8x8x8xf32, #tpu.memory_space<vmem>>, vector<1x8x8xf32>
    %115 = vector.shape_cast %114 : vector<1x8x8xf32> to vector<8x8xf32>
    %116 = vector.shape_cast %113 : vector<8x8xf32> to vector<1x8x8xf32>
    tpu.vector_store %arg28[%c3, %c0_81, %c0_82], %116 {strides = array<i32>} : memref<8x8x8xf32, #tpu.memory_space<vmem>>, vector<1x8x8xf32>,
    %117 = vector.extract_strided_slice %100 {offsets = [0, 32], sizes = [8, 8], strides = [1, 1]} : vector<8x64xf32> to vector<8x8xf32>
    %c4 = arith.constant 4 : index
    %c0_83 = arith.constant 0 : index
    %c0_84 = arith.constant 0 : index
    %118 = vector.load %arg28[%c4, %c0_83, %c0_84] : memref<8x8x8xf32, #tpu.memory_space<vmem>>, vector<1x8x8xf32>
    %119 = vector.shape_cast %118 : vector<1x8x8xf32> to vector<8x8xf32>
    %120 = vector.shape_cast %117 : vector<8x8xf32> to vector<1x8x8xf32>
    tpu.vector_store %arg28[%c4, %c0_83, %c0_84], %120 {strides = array<i32>} : memref<8x8x8xf32, #tpu.memory_space<vmem>>, vector<1x8x8xf32>,
    %121 = vector.extract_strided_slice %100 {offsets = [0, 40], sizes = [8, 8], strides = [1, 1]} : vector<8x64xf32> to vector<8x8xf32>
    %c5 = arith.constant 5 : index
    %c0_85 = arith.constant 0 : index
    %c0_86 = arith.constant 0 : index
    %122 = vector.load %arg28[%c5, %c0_85, %c0_86] : memref<8x8x8xf32, #tpu.memory_space<vmem>>, vector<1x8x8xf32>
    %123 = vector.shape_cast %122 : vector<1x8x8xf32> to vector<8x8xf32>
    %124 = vector.shape_cast %121 : vector<8x8xf32> to vector<1x8x8xf32>
    tpu.vector_store %arg28[%c5, %c0_85, %c0_86], %124 {strides = array<i32>} : memref<8x8x8xf32, #tpu.memory_space<vmem>>, vector<1x8x8xf32>,
    %125 = vector.extract_strided_slice %100 {offsets = [0, 48], sizes = [8, 8], strides = [1, 1]} : vector<8x64xf32> to vector<8x8xf32>
    %c6 = arith.constant 6 : index
    %c0_87 = arith.constant 0 : index
    %c0_88 = arith.constant 0 : index
    %126 = vector.load %arg28[%c6, %c0_87, %c0_88] : memref<8x8x8xf32, #tpu.memory_space<vmem>>, vector<1x8x8xf32>
    %127 = vector.shape_cast %126 : vector<1x8x8xf32> to vector<8x8xf32>
    %128 = vector.shape_cast %125 : vector<8x8xf32> to vector<1x8x8xf32>
    tpu.vector_store %arg28[%c6, %c0_87, %c0_88], %128 {strides = array<i32>} : memref<8x8x8xf32, #tpu.memory_space<vmem>>, vector<1x8x8xf32>,
    %129 = vector.extract_strided_slice %100 {offsets = [0, 56], sizes = [8, 8], strides = [1, 1]} : vector<8x64xf32> to vector<8x8xf32>
    %c7 = arith.constant 7 : index
    %c0_89 = arith.constant 0 : index
    %c0_90 = arith.constant 0 : index
    %130 = vector.load %arg28[%c7, %c0_89, %c0_90] : memref<8x8x8xf32, #tpu.memory_space<vmem>>, vector<1x8x8xf32>
    %131 = vector.shape_cast %130 : vector<1x8x8xf32> to vector<8x8xf32>
    %132 = vector.shape_cast %129 : vector<8x8xf32> to vector<1x8x8xf32>
    tpu.vector_store %arg28[%c7, %c0_89, %c0_90], %132 {strides = array<i32>} : memref<8x8x8xf32, #tpu.memory_space<vmem>>, vector<1x8x8xf32>,
    %c0_91 = arith.constant 0 : index
    %c0_92 = arith.constant 0 : index
    %c0_93 = arith.constant 0 : index
    %133 = vector.load %arg28[%c0_91, %c0_92, %c0_93] : memref<8x8x8xf32, #tpu.memory_space<vmem>>, vector<8x8x8xf32>
    %134 = vector.shape_cast %133 : vector<8x8x8xf32> to vector<64x8xf32>
    %c0_94 = arith.constant 0 : index
    %c0_95 = arith.constant 0 : index
    %135 = vector.load %arg20[%c0_94, %c0_95] : memref<8x32xf32, #tpu.memory_space<vmem>>, vector<8x32xf32>
    %cst_96 = arith.constant dense<0.000000e+00> : vector<64x32xf32>
    %136 = tpu.matmul %134, %135, %cst_96 {dimension_numbers = #tpu.dot_dimension_numbers<[1], [0], [0], [1], [0, 0, 1, 1], [], []>} : vector<64x8xf32>, vector<8x32xf32>, vector<64x32xf32> -> vector<64x32xf32>
    %c0_97 = arith.constant 0 : index
    %c0_98 = arith.constant 0 : index
    %137 = vector.load %arg21[%c0_97, %c0_98] : memref<1x32xf32, #tpu.memory_space<vmem>>, vector<1x32xf32>
    %138 = vector.broadcast %137 : vector<1x32xf32> to vector<64x32xf32>
    %139 = arith.addf %136, %138 : vector<64x32xf32>
    %cst_99 = arith.constant 0.000000e+00 : f32
    %140 = vector.broadcast %cst_99 : f32 to vector<64x32xf32>
    %141 = arith.maximumf %139, %140 : vector<64x32xf32>
    %c0_100 = arith.constant 0 : index
    %c0_101 = arith.constant 0 : index
    %142 = vector.load %arg22[%c0_100, %c0_101] : memref<32x4xf32, #tpu.memory_space<vmem>>, vector<32x4xf32>
    %cst_102 = arith.constant dense<0.000000e+00> : vector<64x4xf32>
    %143 = tpu.matmul %141, %142, %cst_102 {dimension_numbers = #tpu.dot_dimension_numbers<[1], [0], [0], [1], [0, 0, 1, 1], [], []>} : vector<64x32xf32>, vector<32x4xf32>, vector<64x4xf32> -> vector<64x4xf32>
    %c0_103 = arith.constant 0 : index
    %c0_104 = arith.constant 0 : index
    %144 = vector.load %arg23[%c0_103, %c0_104] : memref<1x4xf32, #tpu.memory_space<vmem>>, vector<1x4xf32>
    %145 = vector.broadcast %144 : vector<1x4xf32> to vector<64x4xf32>
    %146 = arith.addf %143, %145 : vector<64x4xf32>
    %147 = vector.shape_cast %146 : vector<64x4xf32> to vector<8x8x4xf32>
    %c0_105 = arith.constant 0 : index
    %c0_106 = arith.constant 0 : index
    %c0_107 = arith.constant 0 : index
    %148 = vector.load %arg26[%c0_105, %c0_106, %c0_107] : memref<8x8x4xf32, #tpu.memory_space<vmem>>, vector<8x8x4xf32>
    tpu.vector_store %arg26[%c0_105, %c0_106, %c0_107], %147 {strides = array<i32>} : memref<8x8x4xf32, #tpu.memory_space<vmem>>, vector<8x8x4xf32>,
    return
  }
  func.func @transform_0(%arg0: i32) -> (i32, i32, i32) {
    %c0_i32 = arith.constant 0 : i32
    %c0_i32_0 = arith.constant 0 : i32
    %c0_i32_1 = arith.constant 0 : i32
    return %c0_i32, %arg0, %c0_i32_0 : i32, i32, i32
  }
  func.func @transform_1(%arg0: i32) -> (i32, i32, i32) {
    %c0_i32 = arith.constant 0 : i32
    %c0_i32_0 = arith.constant 0 : i32
    %c0_i32_1 = arith.constant 0 : i32
    return %c0_i32, %arg0, %c0_i32_0 : i32, i32, i32
  }
  func.func @transform_2(%arg0: i32) -> (i32, i32) {
    %c0_i32 = arith.constant 0 : i32
    %c0_i32_0 = arith.constant 0 : i32
    return %arg0, %c0_i32 : i32, i32
  }
  func.func @transform_3(%arg0: i32) -> (i32, i32) {
    %c0_i32 = arith.constant 0 : i32
    %c0_i32_0 = arith.constant 0 : i32
    %c0_i32_1 = arith.constant 0 : i32
    return %c0_i32, %c0_i32_0 : i32, i32
  }
  func.func @transform_4(%arg0: i32) -> (i32, i32) {
    %c0_i32 = arith.constant 0 : i32
    %c0_i32_0 = arith.constant 0 : i32
    %c0_i32_1 = arith.constant 0 : i32
    return %c0_i32, %c0_i32_0 : i32, i32
  }
  func.func @transform_5(%arg0: i32) -> (i32, i32) {
    %c0_i32 = arith.constant 0 : i32
    %c0_i32_0 = arith.constant 0 : i32
    %c0_i32_1 = arith.constant 0 : i32
    return %c0_i32, %c0_i32_0 : i32, i32
  }
  func.func @transform_6(%arg0: i32) -> (i32, i32) {
    %c0_i32 = arith.constant 0 : i32
    %c0_i32_0 = arith.constant 0 : i32
    %c0_i32_1 = arith.constant 0 : i32
    return %c0_i32, %c0_i32_0 : i32, i32
  }
  func.func @transform_7(%arg0: i32) -> (i32, i32) {
    %c0_i32 = arith.constant 0 : i32
    %c0_i32_0 = arith.constant 0 : i32
    %c0_i32_1 = arith.constant 0 : i32
    return %c0_i32, %c0_i32_0 : i32, i32
  }
  func.func @transform_8(%arg0: i32) -> (i32, i32) {
    %c0_i32 = arith.constant 0 : i32
    %c0_i32_0 = arith.constant 0 : i32
    %c0_i32_1 = arith.constant 0 : i32
    return %c0_i32, %c0_i32_0 : i32, i32
  }
  func.func @transform_9(%arg0: i32) -> (i32, i32) {
    %c0_i32 = arith.constant 0 : i32
    %c0_i32_0 = arith.constant 0 : i32
    %c0_i32_1 = arith.constant 0 : i32
    return %c0_i32, %c0_i32_0 : i32, i32
  }
  func.func @transform_10(%arg0: i32) -> (i32, i32) {
    %c0_i32 = arith.constant 0 : i32
    %c0_i32_0 = arith.constant 0 : i32
    %c0_i32_1 = arith.constant 0 : i32
    return %c0_i32, %c0_i32_0 : i32, i32
  }
  func.func @transform_11(%arg0: i32) -> (i32, i32) {
    %c0_i32 = arith.constant 0 : i32
    %c0_i32_0 = arith.constant 0 : i32
    %c0_i32_1 = arith.constant 0 : i32
    return %c0_i32, %c0_i32_0 : i32, i32
  }
  func.func @transform_12(%arg0: i32) -> (i32, i32) {
    %c0_i32 = arith.constant 0 : i32
    %c0_i32_0 = arith.constant 0 : i32
    %c0_i32_1 = arith.constant 0 : i32
    return %c0_i32, %c0_i32_0 : i32, i32
  }
  func.func @transform_13(%arg0: i32) -> (i32, i32) {
    %c0_i32 = arith.constant 0 : i32
    %c0_i32_0 = arith.constant 0 : i32
    %c0_i32_1 = arith.constant 0 : i32
    return %c0_i32, %c0_i32_0 : i32, i32
  }
  func.func @transform_14(%arg0: i32) -> (i32, i32) {
    %c0_i32 = arith.constant 0 : i32
    %c0_i32_0 = arith.constant 0 : i32
    %c0_i32_1 = arith.constant 0 : i32
    return %c0_i32, %c0_i32_0 : i32, i32
  }
  func.func @transform_15(%arg0: i32) -> (i32, i32) {
    %c0_i32 = arith.constant 0 : i32
    %c0_i32_0 = arith.constant 0 : i32
    %c0_i32_1 = arith.constant 0 : i32
    return %c0_i32, %c0_i32_0 : i32, i32
  }
  func.func @transform_16(%arg0: i32) -> (i32, i32) {
    %c0_i32 = arith.constant 0 : i32
    %c0_i32_0 = arith.constant 0 : i32
    %c0_i32_1 = arith.constant 0 : i32
    return %c0_i32, %c0_i32_0 : i32, i32
  }
  func.func @transform_17(%arg0: i32) -> (i32, i32) {
    %c0_i32 = arith.constant 0 : i32
    %c0_i32_0 = arith.constant 0 : i32
    %c0_i32_1 = arith.constant 0 : i32
    return %c0_i32, %c0_i32_0 : i32, i32
  }
  func.func @transform_18(%arg0: i32) -> (i32, i32) {
    %c0_i32 = arith.constant 0 : i32
    %c0_i32_0 = arith.constant 0 : i32
    %c0_i32_1 = arith.constant 0 : i32
    return %c0_i32, %c0_i32_0 : i32, i32
  }
  func.func @transform_19(%arg0: i32) -> (i32, i32) {
    %c0_i32 = arith.constant 0 : i32
    %c0_i32_0 = arith.constant 0 : i32
    %c0_i32_1 = arith.constant 0 : i32
    return %c0_i32, %c0_i32_0 : i32, i32
  }
  func.func @transform_20(%arg0: i32) -> (i32, i32) {
    %c0_i32 = arith.constant 0 : i32
    %c0_i32_0 = arith.constant 0 : i32
    %c0_i32_1 = arith.constant 0 : i32
    return %c0_i32, %c0_i32_0 : i32, i32
  }
  func.func @transform_21(%arg0: i32) -> (i32, i32) {
    %c0_i32 = arith.constant 0 : i32
    %c0_i32_0 = arith.constant 0 : i32
    %c0_i32_1 = arith.constant 0 : i32
    return %c0_i32, %c0_i32_0 : i32, i32
  }
  func.func @transform_22(%arg0: i32) -> (i32, i32) {
    %c0_i32 = arith.constant 0 : i32
    %c0_i32_0 = arith.constant 0 : i32
    %c0_i32_1 = arith.constant 0 : i32
    return %c0_i32, %c0_i32_0 : i32, i32
  }
  func.func @transform_23(%arg0: i32) -> (i32, i32, i32) {
    %c0_i32 = arith.constant 0 : i32
    %c0_i32_0 = arith.constant 0 : i32
    %c0_i32_1 = arith.constant 0 : i32
    return %c0_i32, %arg0, %c0_i32_0 : i32, i32, i32
  }
  func.func @transform_24(%arg0: i32) -> (i32, i32) {
    %c0_i32 = arith.constant 0 : i32
    %c0_i32_0 = arith.constant 0 : i32
    return %arg0, %c0_i32 : i32, i32
  }
  func.func @transform_25(%arg0: i32) -> (i32, i32, i32) {
    %c0_i32 = arith.constant 0 : i32
    %c0_i32_0 = arith.constant 0 : i32
    %c0_i32_1 = arith.constant 0 : i32
    return %c0_i32, %arg0, %c0_i32_0 : i32, i32, i32
  }
}

</mosaic_0001>

<llo_original>
// kernel: _lambda_.1
$region0: #{_lambda_.1}
  #allocation0 [shape = 'u32[]', space=smem, size = 0x4, offset = 0x4, fixed_abs, tag = 'smem constant byte address 0x4 - core index']
  #allocation1 [shape = 'u32[72,128]{1,0:T(1,128)}', space=vmem, size = 0x9000, scoped, tag = 'internal scratch']
  #allocation2 [shape = 'f32[8,64]{1,0:T(8,128)}', space=vmem, size = 0x1000, scoped, tag = 'scratch operand']
  #allocation3 [shape = 'f32[8,8,8]{2,1,0:T(8,128)}', space=vmem, size = 0x8000, scoped, tag = 'scratch operand']
  %s0 = inlined_call_operand.vmem [shape: f32[8,24,4], index: 0, kind: input, shape index: {}]
  %s1 = inlined_call_operand.vmem [shape: f32[8,24,8], index: 1, kind: input, shape index: {}]
  %s2 = inlined_call_operand.vmem [shape: f32[24,16], index: 2, kind: input, shape index: {}]
  %s3 = inlined_call_operand.vmem [shape: f32[4,32], index: 3, kind: input, shape index: {}]
  %s4 = inlined_call_operand.vmem [shape: f32[1,32], index: 4, kind: input, shape index: {}]
  %s5 = inlined_call_operand.vmem [shape: f32[32,32], index: 5, kind: input, shape index: {}]
  %s6 = inlined_call_operand.vmem [shape: f32[1,32], index: 6, kind: input, shape index: {}]
  %s7 = inlined_call_operand.vmem [shape: f32[32,16], index: 7, kind: input, shape index: {}]
  %s8 = inlined_call_operand.vmem [shape: f32[1,16], index: 8, kind: input, shape index: {}]
  %s9 = inlined_call_operand.vmem [shape: f32[64,32], index: 9, kind: input, shape index: {}]
  %s10 = inlined_call_operand.vmem [shape: f32[1,32], index: 10, kind: input, shape index: {}]
  %s11 = inlined_call_operand.vmem [shape: f32[32,32], index: 11, kind: input, shape index: {}]
  %s12 = inlined_call_operand.vmem [shape: f32[1,32], index: 12, kind: input, shape index: {}]
  %s13 = inlined_call_operand.vmem [shape: f32[32,32], index: 13, kind: input, shape index: {}]
  %s14 = inlined_call_operand.vmem [shape: f32[1,32], index: 14, kind: input, shape index: {}]
  %s15 = inlined_call_operand.vmem [shape: f32[16,32], index: 15, kind: input, shape index: {}]
  %s16 = inlined_call_operand.vmem [shape: f32[1,32], index: 16, kind: input, shape index: {}]
  %s17 = inlined_call_operand.vmem [shape: f32[32,64], index: 17, kind: input, shape index: {}]
  %s18 = inlined_call_operand.vmem [shape: f32[1,64], index: 18, kind: input, shape index: {}]
  %s19 = inlined_call_operand.vmem [shape: f32[8,32], index: 19, kind: input, shape index: {}]
  %s20 = inlined_call_operand.vmem [shape: f32[1,32], index: 20, kind: input, shape index: {}]
  %s21 = inlined_call_operand.vmem [shape: f32[32,4], index: 21, kind: input, shape index: {}]
  %s22 = inlined_call_operand.vmem [shape: f32[1,4], index: 22, kind: input, shape index: {}]
  %s23 = inlined_call_operand.vmem [shape: f32[8,24,24], index: 23, kind: output, shape index: {0}]
  %s24 = inlined_call_operand.vmem [shape: f32[24,48], index: 24, kind: output, shape index: {1}]
  %s25 = inlined_call_operand.vmem [shape: f32[8,24,4], index: 25, kind: output, shape index: {2}]
  %26 = xla_tuple %s23, %s24, %s25
  %s27 = sld [smem:[#allocation0]]
  $region285: #{_lambda_.1} parent=0
    _
  %s29 = ssub.s32 1, %s27
  %s30 = scalar_select 0, %s29, %s27
  $region1: #{_lambda_.1} parent=0
    #allocation4 [shape = 'u8[65536]{0}', space=vmem, size = 0x10000, scoped, tag = 'input window, operand 0']
    #allocation5 [shape = 'u8[65536]{0}', space=vmem, size = 0x10000, scoped, tag = 'input window, operand 1']
    #allocation6 [shape = 'u8[65536]{0}', space=vmem, size = 0x10000, scoped, tag = 'output window, operand 0']
    #allocation7 [shape = 'u8[65536]{0}', space=vmem, size = 0x10000, scoped, tag = 'output window, operand 2']
    loop: start=0, step=1, limit=5
    $region2: #{_lambda_.1} parent=1 // loop_pre_header
      _
    $region3: #{_lambda_.1} parent=1 // loop_header
      %s32 = sphi 0, %s36
      %p33 = scmp.ge.s32.totalorder %s32, 5
      %s42 = sphi 0, %s44
      %s45 = sphi 0, %s42
      %s46 = sphi 0, %s45
      %s62 = sphi 0, %s46
      %s68 = sphi 0, %s70
      %s71 = sphi 0, %s68
      %s72 = sphi 0, %s71
      %s88 = sphi 0, %s72
      %s94 = sphi 0, %s96
      %s97 = sphi 0, %s94
      %s98 = sphi 0, %s97
      %s114 = sphi 0, %s98
      %s118 = sphi 0, %s118
      %s120 = sphi 0, %s118
      %s121 = sphi 0, %s120
      %s135 = sphi 0, %s121
      %s139 = sphi 0, %s139
      %s141 = sphi 0, %s139
      %s142 = sphi 0, %s141
      %s156 = sphi 0, %s142
      %s160 = sphi 0, %s160
      %s162 = sphi 0, %s160
      %s163 = sphi 0, %s162
      %s177 = sphi 0, %s163
      %s181 = sphi 0, %s181
      %s183 = sphi 0, %s181
      %s184 = sphi 0, %s183
      %s198 = sphi 0, %s184
      %s202 = sphi 0, %s202
      %s204 = sphi 0, %s202
      %s205 = sphi 0, %s204
      %s219 = sphi 0, %s205
      %s223 = sphi 0, %s223
      %s225 = sphi 0, %s223
      %s226 = sphi 0, %s225
      %s240 = sphi 0, %s226
      %s244 = sphi 0, %s244
      %s246 = sphi 0, %s244
      %s247 = sphi 0, %s246
      %s261 = sphi 0, %s247
      %s265 = sphi 0, %s265
      %s267 = sphi 0, %s265
      %s268 = sphi 0, %s267
      %s282 = sphi 0, %s268
      %s286 = sphi 0, %s286
      %s288 = sphi 0, %s286
      %s289 = sphi 0, %s288
      %s303 = sphi 0, %s289
      %s307 = sphi 0, %s307
      %s309 = sphi 0, %s307
      %s310 = sphi 0, %s309
      %s324 = sphi 0, %s310
      %s328 = sphi 0, %s328
      %s330 = sphi 0, %s328
      %s331 = sphi 0, %s330
      %s345 = sphi 0, %s331
      %s349 = sphi 0, %s349
      %s351 = sphi 0, %s349
      %s352 = sphi 0, %s351
      %s366 = sphi 0, %s352
      %s370 = sphi 0, %s370
      %s372 = sphi 0, %s370
      %s373 = sphi 0, %s372
      %s387 = sphi 0, %s373
      %s391 = sphi 0, %s391
      %s393 = sphi 0, %s391
      %s394 = sphi 0, %s393
      %s408 = sphi 0, %s394
      %s412 = sphi 0, %s412
      %s414 = sphi 0, %s412
      %s415 = sphi 0, %s414
      %s429 = sphi 0, %s415
      %s433 = sphi 0, %s433
      %s435 = sphi 0, %s433
      %s436 = sphi 0, %s435
      %s450 = sphi 0, %s436
      %s454 = sphi 0, %s454
      %s456 = sphi 0, %s454
      %s457 = sphi 0, %s456
      %s471 = sphi 0, %s457
      %s475 = sphi 0, %s475
      %s477 = sphi 0, %s475
      %s478 = sphi 0, %s477
      %s492 = sphi 0, %s478
      %s496 = sphi 0, %s496
      %s498 = sphi 0, %s496
      %s499 = sphi 0, %s498
      %s513 = sphi 0, %s499
      %s517 = sphi 0, %s517
      %s519 = sphi 0, %s517
      %s520 = sphi 0, %s519
      %s534 = sphi 0, %s520
      %s540 = sphi 0, %s542
      %s543 = sphi 0, %s540
      %s544 = sphi 0, %s543
      %s560 = sphi 0, %s544
      %s566 = sphi 0, %s568
      %s569 = sphi 0, %s566
      %s570 = sphi 0, %s569
      %s586 = sphi 0, %s570
      %s592 = sphi 0, %s594
      %s595 = sphi 0, %s592
      %s596 = sphi 0, %s595
      %s612 = sphi 0, %s596
    $region4: #{_lambda_.1} parent=1 // loop_header_branch
      %35 = sbr.rel (%p33) target = $region8
    $region5: #{_lambda_.1} parent=1 // loop_body
      %s37 = ssub.s32 %s32, 1
      %s38 = ssub.s32 %s32, 2
      %s39 = sadd.s32 %s32, 1
      %s40 = ssub.s32 %s32, %s39
      %p41 = scmp.eq.s32.totalorder %s40, 0
      %s43 = sadd.s32 %s42, 1
      %s44 = scalar_select %p41, %s42, %s43
      %p47 = pneg %p41
      %p48 = scmp.eq.s32.totalorder %s32, 2
      %p49 = por %p47, %p48
      %p50 = scmp.ne.s32.totalorder %s42, %s45
      %p51 = scmp.eq.s32.totalorder %s32, 0
      %p52 = por %p50, %p51
      %p53 = scmp.ne.s32.totalorder %s42, %s45
      %p54 = scmp.eq.s32.totalorder %s37, 2
      %p55 = por %p53, %p54
      %p56 = scmp.ne.s32.totalorder %s45, %s46
      %p57 = scmp.eq.s32.totalorder %s37, 0
      %p58 = por %p56, %p57
      %p59 = scmp.ne.s32.totalorder %s45, %s46
      %p60 = scmp.eq.s32.totalorder %s38, 2
      %p61 = por %p59, %p60
      %p63 = scmp.ne.s32.totalorder %s46, %s62
      %p64 = scmp.eq.s32.totalorder %s38, 0
      %p65 = por %p63, %p64
      %s66 = ssub.s32 %s32, %s39
      %p67 = scmp.eq.s32.totalorder %s66, 0
      %s69 = sadd.s32 %s68, 1
      %s70 = scalar_select %p67, %s68, %s69
      %p73 = pneg %p67
      %p74 = scmp.eq.s32.totalorder %s32, 2
      %p75 = por %p73, %p74
      %p76 = scmp.ne.s32.totalorder %s68, %s71
      %p77 = scmp.eq.s32.totalorder %s32, 0
      %p78 = por %p76, %p77
      %p79 = scmp.ne.s32.totalorder %s68, %s71
      %p80 = scmp.eq.s32.totalorder %s37, 2
      %p81 = por %p79, %p80
      %p82 = scmp.ne.s32.totalorder %s71, %s72
      %p83 = scmp.eq.s32.totalorder %s37, 0
      %p84 = por %p82, %p83
      %p85 = scmp.ne.s32.totalorder %s71, %s72
      %p86 = scmp.eq.s32.totalorder %s38, 2
      %p87 = por %p85, %p86
      %p89 = scmp.ne.s32.totalorder %s72, %s88
      %p90 = scmp.eq.s32.totalorder %s38, 0
      %p91 = por %p89, %p90
      %s92 = ssub.s32 %s32, %s39
      %p93 = scmp.eq.s32.totalorder %s92, 0
      %s95 = sadd.s32 %s94, 1
      %s96 = scalar_select %p93, %s94, %s95
      %p99 = pneg %p93
      %p100 = scmp.eq.s32.totalorder %s32, 2
      %p101 = por %p99, %p100
      %p102 = scmp.ne.s32.totalorder %s94, %s97
      %p103 = scmp.eq.s32.totalorder %s32, 0
      %p104 = por %p102, %p103
      %p105 = scmp.ne.s32.totalorder %s94, %s97
      %p106 = scmp.eq.s32.totalorder %s37, 2
      %p107 = por %p105, %p106
      %p108 = scmp.ne.s32.totalorder %s97, %s98
      %p109 = scmp.eq.s32.totalorder %s37, 0
      %p110 = por %p108, %p109
      %p111 = scmp.ne.s32.totalorder %s97, %s98
      %p112 = scmp.eq.s32.totalorder %s38, 2
      %p113 = por %p111, %p112
      %p115 = scmp.ne.s32.totalorder %s98, %s114
      %p116 = scmp.eq.s32.totalorder %s38, 0
      %p117 = por %p115, %p116
      %s119 = sadd.s32 %s118, 1
      %p122 = scmp.eq.s32.totalorder %s32, 2
      %p123 = scmp.ne.s32.totalorder %s118, %s120
      %p124 = scmp.eq.s32.totalorder %s32, 0
      %p125 = por %p123, %p124
      %p126 = scmp.ne.s32.totalorder %s118, %s120
      %p127 = scmp.eq.s32.totalorder %s37, 2
      %p128 = por %p126, %p127
      %p129 = scmp.ne.s32.totalorder %s120, %s121
      %p130 = scmp.eq.s32.totalorder %s37, 0
      %p131 = por %p129, %p130
      %p132 = scmp.ne.s32.totalorder %s120, %s121
      %p133 = scmp.eq.s32.totalorder %s38, 2
      %p134 = por %p132, %p133
      %p136 = scmp.ne.s32.totalorder %s121, %s135
      %p137 = scmp.eq.s32.totalorder %s38, 0
      %p138 = por %p136, %p137
      %s140 = sadd.s32 %s139, 1
      %p143 = scmp.eq.s32.totalorder %s32, 2
      %p144 = scmp.ne.s32.totalorder %s139, %s141
      %p145 = scmp.eq.s32.totalorder %s32, 0
      %p146 = por %p144, %p145
      %p147 = scmp.ne.s32.totalorder %s139, %s141
      %p148 = scmp.eq.s32.totalorder %s37, 2
      %p149 = por %p147, %p148
      %p150 = scmp.ne.s32.totalorder %s141, %s142
      %p151 = scmp.eq.s32.totalorder %s37, 0
      %p152 = por %p150, %p151
      %p153 = scmp.ne.s32.totalorder %s141, %s142
      %p154 = scmp.eq.s32.totalorder %s38, 2
      %p155 = por %p153, %p154
      %p157 = scmp.ne.s32.totalorder %s142, %s156
      %p158 = scmp.eq.s32.totalorder %s38, 0
      %p159 = por %p157, %p158
      %s161 = sadd.s32 %s160, 1
      %p164 = scmp.eq.s32.totalorder %s32, 2
      %p165 = scmp.ne.s32.totalorder %s160, %s162
      %p166 = scmp.eq.s32.totalorder %s32, 0
      %p167 = por %p165, %p166
      %p168 = scmp.ne.s32.totalorder %s160, %s162
      %p169 = scmp.eq.s32.totalorder %s37, 2
      %p170 = por %p168, %p169
      %p171 = scmp.ne.s32.totalorder %s162, %s163
      %p172 = scmp.eq.s32.totalorder %s37, 0
      %p173 = por %p171, %p172
      %p174 = scmp.ne.s32.totalorder %s162, %s163
      %p175 = scmp.eq.s32.totalorder %s38, 2
      %p176 = por %p174, %p175
      %p178 = scmp.ne.s32.totalorder %s163, %s177
      %p179 = scmp.eq.s32.totalorder %s38, 0
      %p180 = por %p178, %p179
      %s182 = sadd.s32 %s181, 1
      %p185 = scmp.eq.s32.totalorder %s32, 2
      %p186 = scmp.ne.s32.totalorder %s181, %s183
      %p187 = scmp.eq.s32.totalorder %s32, 0
      %p188 = por %p186, %p187
      %p189 = scmp.ne.s32.totalorder %s181, %s183
      %p190 = scmp.eq.s32.totalorder %s37, 2
      %p191 = por %p189, %p190
      %p192 = scmp.ne.s32.totalorder %s183, %s184
      %p193 = scmp.eq.s32.totalorder %s37, 0
      %p194 = por %p192, %p193
      %p195 = scmp.ne.s32.totalorder %s183, %s184
      %p196 = scmp.eq.s32.totalorder %s38, 2
      %p197 = por %p195, %p196
      %p199 = scmp.ne.s32.totalorder %s184, %s198
      %p200 = scmp.eq.s32.totalorder %s38, 0
      %p201 = por %p199, %p200
      %s203 = sadd.s32 %s202, 1
      %p206 = scmp.eq.s32.totalorder %s32, 2
      %p207 = scmp.ne.s32.totalorder %s202, %s204
      %p208 = scmp.eq.s32.totalorder %s32, 0
      %p209 = por %p207, %p208
      %p210 = scmp.ne.s32.totalorder %s202, %s204
      %p211 = scmp.eq.s32.totalorder %s37, 2
      %p212 = por %p210, %p211
      %p213 = scmp.ne.s32.totalorder %s204, %s205
      %p214 = scmp.eq.s32.totalorder %s37, 0
      %p215 = por %p213, %p214
      %p216 = scmp.ne.s32.totalorder %s204, %s205
      %p217 = scmp.eq.s32.totalorder %s38, 2
      %p218 = por %p216, %p217
      %p220 = scmp.ne.s32.totalorder %s205, %s219
      %p221 = scmp.eq.s32.totalorder %s38, 0
      %p222 = por %p220, %p221
      %s224 = sadd.s32 %s223, 1
      %p227 = scmp.eq.s32.totalorder %s32, 2
      %p228 = scmp.ne.s32.totalorder %s223, %s225
      %p229 = scmp.eq.s32.totalorder %s32, 0
      %p230 = por %p228, %p229
      %p231 = scmp.ne.s32.totalorder %s223, %s225
      %p232 = scmp.eq.s32.totalorder %s37, 2
      %p233 = por %p231, %p232
      %p234 = scmp.ne.s32.totalorder %s225, %s226
      %p235 = scmp.eq.s32.totalorder %s37, 0
      %p236 = por %p234, %p235
      %p237 = scmp.ne.s32.totalorder %s225, %s226
      %p238 = scmp.eq.s32.totalorder %s38, 2
      %p239 = por %p237, %p238
      %p241 = scmp.ne.s32.totalorder %s226, %s240
      %p242 = scmp.eq.s32.totalorder %s38, 0
      %p243 = por %p241, %p242
      %s245 = sadd.s32 %s244, 1
      %p248 = scmp.eq.s32.totalorder %s32, 2
      %p249 = scmp.ne.s32.totalorder %s244, %s246
      %p250 = scmp.eq.s32.totalorder %s32, 0
      %p251 = por %p249, %p250
      %p252 = scmp.ne.s32.totalorder %s244, %s246
      %p253 = scmp.eq.s32.totalorder %s37, 2
      %p254 = por %p252, %p253
      %p255 = scmp.ne.s32.totalorder %s246, %s247
      %p256 = scmp.eq.s32.totalorder %s37, 0
      %p257 = por %p255, %p256
      %p258 = scmp.ne.s32.totalorder %s246, %s247
      %p259 = scmp.eq.s32.totalorder %s38, 2
      %p260 = por %p258, %p259
      %p262 = scmp.ne.s32.totalorder %s247, %s261
      %p263 = scmp.eq.s32.totalorder %s38, 0
      %p264 = por %p262, %p263
      %s266 = sadd.s32 %s265, 1
      %p269 = scmp.eq.s32.totalorder %s32, 2
      %p270 = scmp.ne.s32.totalorder %s265, %s267
      %p271 = scmp.eq.s32.totalorder %s32, 0
      %p272 = por %p270, %p271
      %p273 = scmp.ne.s32.totalorder %s265, %s267
      %p274 = scmp.eq.s32.totalorder %s37, 2
      %p275 = por %p273, %p274
      %p276 = scmp.ne.s32.totalorder %s267, %s268
      %p277 = scmp.eq.s32.totalorder %s37, 0
      %p278 = por %p276, %p277
      %p279 = scmp.ne.s32.totalorder %s267, %s268
      %p280 = scmp.eq.s32.totalorder %s38, 2
      %p281 = por %p279, %p280
      %p283 = scmp.ne.s32.totalorder %s268, %s282
      %p284 = scmp.eq.s32.totalorder %s38, 0
      %p285 = por %p283, %p284
      %s287 = sadd.s32 %s286, 1
      %p290 = scmp.eq.s32.totalorder %s32, 2
      %p291 = scmp.ne.s32.totalorder %s286, %s288
      %p292 = scmp.eq.s32.totalorder %s32, 0
      %p293 = por %p291, %p292
      %p294 = scmp.ne.s32.totalorder %s286, %s288
      %p295 = scmp.eq.s32.totalorder %s37, 2
      %p296 = por %p294, %p295
      %p297 = scmp.ne.s32.totalorder %s288, %s289
      %p298 = scmp.eq.s32.totalorder %s37, 0
      %p299 = por %p297, %p298
      %p300 = scmp.ne.s32.totalorder %s288, %s289
      %p301 = scmp.eq.s32.totalorder %s38, 2
      %p302 = por %p300, %p301
      %p304 = scmp.ne.s32.totalorder %s289, %s303
      %p305 = scmp.eq.s32.totalorder %s38, 0
      %p306 = por %p304, %p305
      %s308 = sadd.s32 %s307, 1
      %p311 = scmp.eq.s32.totalorder %s32, 2
      %p312 = scmp.ne.s32.totalorder %s307, %s309
      %p313 = scmp.eq.s32.totalorder %s32, 0
      %p314 = por %p312, %p313
      %p315 = scmp.ne.s32.totalorder %s307, %s309
      %p316 = scmp.eq.s32.totalorder %s37, 2
      %p317 = por %p315, %p316
      %p318 = scmp.ne.s32.totalorder %s309, %s310
      %p319 = scmp.eq.s32.totalorder %s37, 0
      %p320 = por %p318, %p319
      %p321 = scmp.ne.s32.totalorder %s309, %s310
      %p322 = scmp.eq.s32.totalorder %s38, 2
      %p323 = por %p321, %p322
      %p325 = scmp.ne.s32.totalorder %s310, %s324
      %p326 = scmp.eq.s32.totalorder %s38, 0
      %p327 = por %p325, %p326
      %s329 = sadd.s32 %s328, 1
      %p332 = scmp.eq.s32.totalorder %s32, 2
      %p333 = scmp.ne.s32.totalorder %s328, %s330
      %p334 = scmp.eq.s32.totalorder %s32, 0
      %p335 = por %p333, %p334
      %p336 = scmp.ne.s32.totalorder %s328, %s330
      %p337 = scmp.eq.s32.totalorder %s37, 2
      %p338 = por %p336, %p337
      %p339 = scmp.ne.s32.totalorder %s330, %s331
      %p340 = scmp.eq.s32.totalorder %s37, 0
      %p341 = por %p339, %p340
      %p342 = scmp.ne.s32.totalorder %s330, %s331
      %p343 = scmp.eq.s32.totalorder %s38, 2
      %p344 = por %p342, %p343
      %p346 = scmp.ne.s32.totalorder %s331, %s345
      %p347 = scmp.eq.s32.totalorder %s38, 0
      %p348 = por %p346, %p347
      %s350 = sadd.s32 %s349, 1
      %p353 = scmp.eq.s32.totalorder %s32, 2
      %p354 = scmp.ne.s32.totalorder %s349, %s351
      %p355 = scmp.eq.s32.totalorder %s32, 0
      %p356 = por %p354, %p355
      %p357 = scmp.ne.s32.totalorder %s349, %s351
      %p358 = scmp.eq.s32.totalorder %s37, 2
      %p359 = por %p357, %p358
      %p360 = scmp.ne.s32.totalorder %s351, %s352
      %p361 = scmp.eq.s32.totalorder %s37, 0
      %p362 = por %p360, %p361
      %p363 = scmp.ne.s32.totalorder %s351, %s352
      %p364 = scmp.eq.s32.totalorder %s38, 2
      %p365 = por %p363, %p364
      %p367 = scmp.ne.s32.totalorder %s352, %s366
      %p368 = scmp.eq.s32.totalorder %s38, 0
      %p369 = por %p367, %p368
      %s371 = sadd.s32 %s370, 1
      %p374 = scmp.eq.s32.totalorder %s32, 2
      %p375 = scmp.ne.s32.totalorder %s370, %s372
      %p376 = scmp.eq.s32.totalorder %s32, 0
      %p377 = por %p375, %p376
      %p378 = scmp.ne.s32.totalorder %s370, %s372
      %p379 = scmp.eq.s32.totalorder %s37, 2
      %p380 = por %p378, %p379
      %p381 = scmp.ne.s32.totalorder %s372, %s373
      %p382 = scmp.eq.s32.totalorder %s37, 0
      %p383 = por %p381, %p382
      %p384 = scmp.ne.s32.totalorder %s372, %s373
      %p385 = scmp.eq.s32.totalorder %s38, 2
      %p386 = por %p384, %p385
      %p388 = scmp.ne.s32.totalorder %s373, %s387
      %p389 = scmp.eq.s32.totalorder %s38, 0
      %p390 = por %p388, %p389
      %s392 = sadd.s32 %s391, 1
      %p395 = scmp.eq.s32.totalorder %s32, 2
      %p396 = scmp.ne.s32.totalorder %s391, %s393
      %p397 = scmp.eq.s32.totalorder %s32, 0
      %p398 = por %p396, %p397
      %p399 = scmp.ne.s32.totalorder %s391, %s393
      %p400 = scmp.eq.s32.totalorder %s37, 2
      %p401 = por %p399, %p400
      %p402 = scmp.ne.s32.totalorder %s393, %s394
      %p403 = scmp.eq.s32.totalorder %s37, 0
      %p404 = por %p402, %p403
      %p405 = scmp.ne.s32.totalorder %s393, %s394
      %p406 = scmp.eq.s32.totalorder %s38, 2
      %p407 = por %p405, %p406
      %p409 = scmp.ne.s32.totalorder %s394, %s408
      %p410 = scmp.eq.s32.totalorder %s38, 0
      %p411 = por %p409, %p410
      %s413 = sadd.s32 %s412, 1
      %p416 = scmp.eq.s32.totalorder %s32, 2
      %p417 = scmp.ne.s32.totalorder %s412, %s414
      %p418 = scmp.eq.s32.totalorder %s32, 0
      %p419 = por %p417, %p418
      %p420 = scmp.ne.s32.totalorder %s412, %s414
      %p421 = scmp.eq.s32.totalorder %s37, 2
      %p422 = por %p420, %p421
      %p423 = scmp.ne.s32.totalorder %s414, %s415
      %p424 = scmp.eq.s32.totalorder %s37, 0
      %p425 = por %p423, %p424
      %p426 = scmp.ne.s32.totalorder %s414, %s415
      %p427 = scmp.eq.s32.totalorder %s38, 2
      %p428 = por %p426, %p427
      %p430 = scmp.ne.s32.totalorder %s415, %s429
      %p431 = scmp.eq.s32.totalorder %s38, 0
      %p432 = por %p430, %p431
      %s434 = sadd.s32 %s433, 1
      %p437 = scmp.eq.s32.totalorder %s32, 2
      %p438 = scmp.ne.s32.totalorder %s433, %s435
      %p439 = scmp.eq.s32.totalorder %s32, 0
      %p440 = por %p438, %p439
      %p441 = scmp.ne.s32.totalorder %s433, %s435
      %p442 = scmp.eq.s32.totalorder %s37, 2
      %p443 = por %p441, %p442
      %p444 = scmp.ne.s32.totalorder %s435, %s436
      %p445 = scmp.eq.s32.totalorder %s37, 0
      %p446 = por %p444, %p445
      %p447 = scmp.ne.s32.totalorder %s435, %s436
      %p448 = scmp.eq.s32.totalorder %s38, 2
      %p449 = por %p447, %p448
      %p451 = scmp.ne.s32.totalorder %s436, %s450
      %p452 = scmp.eq.s32.totalorder %s38, 0
      %p453 = por %p451, %p452
      %s455 = sadd.s32 %s454, 1
      %p458 = scmp.eq.s32.totalorder %s32, 2
      %p459 = scmp.ne.s32.totalorder %s454, %s456
      %p460 = scmp.eq.s32.totalorder %s32, 0
      %p461 = por %p459, %p460
      %p462 = scmp.ne.s32.totalorder %s454, %s456
      %p463 = scmp.eq.s32.totalorder %s37, 2
      %p464 = por %p462, %p463
      %p465 = scmp.ne.s32.totalorder %s456, %s457
      %p466 = scmp.eq.s32.totalorder %s37, 0
      %p467 = por %p465, %p466
      %p468 = scmp.ne.s32.totalorder %s456, %s457
      %p469 = scmp.eq.s32.totalorder %s38, 2
      %p470 = por %p468, %p469
      %p472 = scmp.ne.s32.totalorder %s457, %s471
      %p473 = scmp.eq.s32.totalorder %s38, 0
      %p474 = por %p472, %p473
      %s476 = sadd.s32 %s475, 1
      %p479 = scmp.eq.s32.totalorder %s32, 2
      %p480 = scmp.ne.s32.totalorder %s475, %s477
      %p481 = scmp.eq.s32.totalorder %s32, 0
      %p482 = por %p480, %p481
      %p483 = scmp.ne.s32.totalorder %s475, %s477
      %p484 = scmp.eq.s32.totalorder %s37, 2
      %p485 = por %p483, %p484
      %p486 = scmp.ne.s32.totalorder %s477, %s478
      %p487 = scmp.eq.s32.totalorder %s37, 0
      %p488 = por %p486, %p487
      %p489 = scmp.ne.s32.totalorder %s477, %s478
      %p490 = scmp.eq.s32.totalorder %s38, 2
      %p491 = por %p489, %p490
      %p493 = scmp.ne.s32.totalorder %s478, %s492
      %p494 = scmp.eq.s32.totalorder %s38, 0
      %p495 = por %p493, %p494
      %s497 = sadd.s32 %s496, 1
      %p500 = scmp.eq.s32.totalorder %s32, 2
      %p501 = scmp.ne.s32.totalorder %s496, %s498
      %p502 = scmp.eq.s32.totalorder %s32, 0
      %p503 = por %p501, %p502
      %p504 = scmp.ne.s32.totalorder %s496, %s498
      %p505 = scmp.eq.s32.totalorder %s37, 2
      %p506 = por %p504, %p505
      %p507 = scmp.ne.s32.totalorder %s498, %s499
      %p508 = scmp.eq.s32.totalorder %s37, 0
      %p509 = por %p507, %p508
      %p510 = scmp.ne.s32.totalorder %s498, %s499
      %p511 = scmp.eq.s32.totalorder %s38, 2
      %p512 = por %p510, %p511
      %p514 = scmp.ne.s32.totalorder %s499, %s513
      %p515 = scmp.eq.s32.totalorder %s38, 0
      %p516 = por %p514, %p515
      %s518 = sadd.s32 %s517, 1
      %p521 = scmp.eq.s32.totalorder %s32, 2
      %p522 = scmp.ne.s32.totalorder %s517, %s519
      %p523 = scmp.eq.s32.totalorder %s32, 0
      %p524 = por %p522, %p523
      %p525 = scmp.ne.s32.totalorder %s517, %s519
      %p526 = scmp.eq.s32.totalorder %s37, 2
      %p527 = por %p525, %p526
      %p528 = scmp.ne.s32.totalorder %s519, %s520
      %p529 = scmp.eq.s32.totalorder %s37, 0
      %p530 = por %p528, %p529
      %p531 = scmp.ne.s32.totalorder %s519, %s520
      %p532 = scmp.eq.s32.totalorder %s38, 2
      %p533 = por %p531, %p532
      %p535 = scmp.ne.s32.totalorder %s520, %s534
      %p536 = scmp.eq.s32.totalorder %s38, 0
      %p537 = por %p535, %p536
      %s538 = ssub.s32 %s32, %s39
      %p539 = scmp.eq.s32.totalorder %s538, 0
      %s541 = sadd.s32 %s540, 1
      %s542 = scalar_select %p539, %s540, %s541
      %p545 = pneg %p539
      %p546 = scmp.eq.s32.totalorder %s32, 2
      %p547 = por %p545, %p546
      %p548 = scmp.ne.s32.totalorder %s540, %s543
      %p549 = scmp.eq.s32.totalorder %s32, 0
      %p550 = por %p548, %p549
      %p551 = scmp.ne.s32.totalorder %s540, %s543
      %p552 = scmp.eq.s32.totalorder %s37, 2
      %p553 = por %p551, %p552
      %p554 = scmp.ne.s32.totalorder %s543, %s544
      %p555 = scmp.eq.s32.totalorder %s37, 0
      %p556 = por %p554, %p555
      %p557 = scmp.ne.s32.totalorder %s543, %s544
      %p558 = scmp.eq.s32.totalorder %s38, 2
      %p559 = por %p557, %p558
      %p561 = scmp.ne.s32.totalorder %s544, %s560
      %p562 = scmp.eq.s32.totalorder %s38, 0
      %p563 = por %p561, %p562
      %s564 = ssub.s32 %s32, %s39
      %p565 = scmp.eq.s32.totalorder %s564, 0
      %s567 = sadd.s32 %s566, 1
      %s568 = scalar_select %p565, %s566, %s567
      %p571 = pneg %p565
      %p572 = scmp.eq.s32.totalorder %s32, 2
      %p573 = por %p571, %p572
      %p574 = scmp.ne.s32.totalorder %s566, %s569
      %p575 = scmp.eq.s32.totalorder %s32, 0
      %p576 = por %p574, %p575
      %p577 = scmp.ne.s32.totalorder %s566, %s569
      %p578 = scmp.eq.s32.totalorder %s37, 2
      %p579 = por %p577, %p578
      %p580 = scmp.ne.s32.totalorder %s569, %s570
      %p581 = scmp.eq.s32.totalorder %s37, 0
      %p582 = por %p580, %p581
      %p583 = scmp.ne.s32.totalorder %s569, %s570
      %p584 = scmp.eq.s32.totalorder %s38, 2
      %p585 = por %p583, %p584
      %p587 = scmp.ne.s32.totalorder %s570, %s586
      %p588 = scmp.eq.s32.totalorder %s38, 0
      %p589 = por %p587, %p588
      %s590 = ssub.s32 %s32, %s39
      %p591 = scmp.eq.s32.totalorder %s590, 0
      %s593 = sadd.s32 %s592, 1
      %s594 = scalar_select %p591, %s592, %s593
      %p597 = pneg %p591
      %p598 = scmp.eq.s32.totalorder %s32, 2
      %p599 = por %p597, %p598
      %p600 = scmp.ne.s32.totalorder %s592, %s595
      %p601 = scmp.eq.s32.totalorder %s32, 0
      %p602 = por %p600, %p601
      %p603 = scmp.ne.s32.totalorder %s592, %s595
      %p604 = scmp.eq.s32.totalorder %s37, 2
      %p605 = por %p603, %p604
      %p606 = scmp.ne.s32.totalorder %s595, %s596
      %p607 = scmp.eq.s32.totalorder %s37, 0
      %p608 = por %p606, %p607
      %p609 = scmp.ne.s32.totalorder %s595, %s596
      %p610 = scmp.eq.s32.totalorder %s38, 2
      %p611 = por %p609, %p610
      %p613 = scmp.ne.s32.totalorder %s596, %s612
      %p614 = scmp.eq.s32.totalorder %s38, 0
      %p615 = por %p613, %p614
      %p616 = scmp.le.s32.totalorder 1, %s32
      %p617 = scmp.lt.s32.totalorder %s32, 4
      %p618 = pnand %p616, %p617
      %p619 = pneg %p618
      // Predicated region
      $region9: #{_lambda_.1} parent=5 // pred_check
        _
      $region10: #{_lambda_.1} parent=5 // pred_check_branch
        %621 = sbr.rel (%p618) target = $region12
      $region11: #{_lambda_.1} parent=5 // pred_region
        %s622 = ssub.s32 %s32, 1
        // Predicated region
        $region13: #{_lambda_.1} parent=11 // pred_check
          %p623 = pneg %p131
        $region14: #{_lambda_.1} parent=11 // pred_check_branch
          %625 = sbr.rel (%p623) target = $region16
        $region15: #{_lambda_.1} parent=11 // pred_region
          _
        $region16: #{_lambda_.1} parent=11 // pred_fallthru
          _
        // Predicated region
        $region17: #{_lambda_.1} parent=11 // pred_check
          %p626 = pneg %p152
        $region18: #{_lambda_.1} parent=11 // pred_check_branch
          %628 = sbr.rel (%p626) target = $region20
        $region19: #{_lambda_.1} parent=11 // pred_region
          _
        $region20: #{_lambda_.1} parent=11 // pred_fallthru
          _
        // Predicated region
        $region21: #{_lambda_.1} parent=11 // pred_check
          %p629 = pneg %p173
        $region22: #{_lambda_.1} parent=11 // pred_check_branch
          %631 = sbr.rel (%p629) target = $region24
        $region23: #{_lambda_.1} parent=11 // pred_region
          _
        $region24: #{_lambda_.1} parent=11 // pred_fallthru
          _
        // Predicated region
        $region25: #{_lambda_.1} parent=11 // pred_check
          %p632 = pneg %p194
        $region26: #{_lambda_.1} parent=11 // pred_check_branch
          %634 = sbr.rel (%p632) target = $region28
        $region27: #{_lambda_.1} parent=11 // pred_region
          _
        $region28: #{_lambda_.1} parent=11 // pred_fallthru
          _
        // Predicated region
        $region29: #{_lambda_.1} parent=11 // pred_check
          %p635 = pneg %p215
        $region30: #{_lambda_.1} parent=11 // pred_check_branch
          %637 = sbr.rel (%p635) target = $region32
        $region31: #{_lambda_.1} parent=11 // pred_region
          _
        $region32: #{_lambda_.1} parent=11 // pred_fallthru
          _
        // Predicated region
        $region33: #{_lambda_.1} parent=11 // pred_check
          %p638 = pneg %p236
        $region34: #{_lambda_.1} parent=11 // pred_check_branch
          %640 = sbr.rel (%p638) target = $region36
        $region35: #{_lambda_.1} parent=11 // pred_region
          _
        $region36: #{_lambda_.1} parent=11 // pred_fallthru
          _
        // Predicated region
        $region37: #{_lambda_.1} parent=11 // pred_check
          %p641 = pneg %p257
        $region38: #{_lambda_.1} parent=11 // pred_check_branch
          %643 = sbr.rel (%p641) target = $region40
        $region39: #{_lambda_.1} parent=11 // pred_region
          _
        $region40: #{_lambda_.1} parent=11 // pred_fallthru
          _
        // Predicated region
        $region41: #{_lambda_.1} parent=11 // pred_check
          %p644 = pneg %p278
        $region42: #{_lambda_.1} parent=11 // pred_check_branch
          %646 = sbr.rel (%p644) target = $region44
        $region43: #{_lambda_.1} parent=11 // pred_region
          _
        $region44: #{_lambda_.1} parent=11 // pred_fallthru
          _
        // Predicated region
        $region45: #{_lambda_.1} parent=11 // pred_check
          %p647 = pneg %p299
        $region46: #{_lambda_.1} parent=11 // pred_check_branch
          %649 = sbr.rel (%p647) target = $region48
        $region47: #{_lambda_.1} parent=11 // pred_region
          _
        $region48: #{_lambda_.1} parent=11 // pred_fallthru
          _
        // Predicated region
        $region49: #{_lambda_.1} parent=11 // pred_check
          %p650 = pneg %p320
        $region50: #{_lambda_.1} parent=11 // pred_check_branch
          %652 = sbr.rel (%p650) target = $region52
        $region51: #{_lambda_.1} parent=11 // pred_region
          _
        $region52: #{_lambda_.1} parent=11 // pred_fallthru
          _
        // Predicated region
        $region53: #{_lambda_.1} parent=11 // pred_check
          %p653 = pneg %p341
        $region54: #{_lambda_.1} parent=11 // pred_check_branch
          %655 = sbr.rel (%p653) target = $region56
        $region55: #{_lambda_.1} parent=11 // pred_region
          _
        $region56: #{_lambda_.1} parent=11 // pred_fallthru
          _
        // Predicated region
        $region57: #{_lambda_.1} parent=11 // pred_check
          %p656 = pneg %p362
        $region58: #{_lambda_.1} parent=11 // pred_check_branch
          %658 = sbr.rel (%p656) target = $region60
        $region59: #{_lambda_.1} parent=11 // pred_region
          _
        $region60: #{_lambda_.1} parent=11 // pred_fallthru
          _
        // Predicated region
        $region61: #{_lambda_.1} parent=11 // pred_check
          %p659 = pneg %p383
        $region62: #{_lambda_.1} parent=11 // pred_check_branch
          %661 = sbr.rel (%p659) target = $region64
        $region63: #{_lambda_.1} parent=11 // pred_region
          _
        $region64: #{_lambda_.1} parent=11 // pred_fallthru
          _
        // Predicated region
        $region65: #{_lambda_.1} parent=11 // pred_check
          %p662 = pneg %p404
        $region66: #{_lambda_.1} parent=11 // pred_check_branch
          %664 = sbr.rel (%p662) target = $region68
        $region67: #{_lambda_.1} parent=11 // pred_region
          _
        $region68: #{_lambda_.1} parent=11 // pred_fallthru
          _
        // Predicated region
        $region69: #{_lambda_.1} parent=11 // pred_check
          %p665 = pneg %p425
        $region70: #{_lambda_.1} parent=11 // pred_check_branch
          %667 = sbr.rel (%p665) target = $region72
        $region71: #{_lambda_.1} parent=11 // pred_region
          _
        $region72: #{_lambda_.1} parent=11 // pred_fallthru
          _
        // Predicated region
        $region73: #{_lambda_.1} parent=11 // pred_check
          %p668 = pneg %p446
        $region74: #{_lambda_.1} parent=11 // pred_check_branch
          %670 = sbr.rel (%p668) target = $region76
        $region75: #{_lambda_.1} parent=11 // pred_region
          _
        $region76: #{_lambda_.1} parent=11 // pred_fallthru
          _
        // Predicated region
        $region77: #{_lambda_.1} parent=11 // pred_check
          %p671 = pneg %p467
        $region78: #{_lambda_.1} parent=11 // pred_check_branch
          %673 = sbr.rel (%p671) target = $region80
        $region79: #{_lambda_.1} parent=11 // pred_region
          _
        $region80: #{_lambda_.1} parent=11 // pred_fallthru
          _
        // Predicated region
        $region81: #{_lambda_.1} parent=11 // pred_check
          %p674 = pneg %p488
        $region82: #{_lambda_.1} parent=11 // pred_check_branch
          %676 = sbr.rel (%p674) target = $region84
        $region83: #{_lambda_.1} parent=11 // pred_region
          _
        $region84: #{_lambda_.1} parent=11 // pred_fallthru
          _
        // Predicated region
        $region85: #{_lambda_.1} parent=11 // pred_check
          %p677 = pneg %p509
        $region86: #{_lambda_.1} parent=11 // pred_check_branch
          %679 = sbr.rel (%p677) target = $region88
        $region87: #{_lambda_.1} parent=11 // pred_region
          _
        $region88: #{_lambda_.1} parent=11 // pred_fallthru
          _
        // Predicated region
        $region89: #{_lambda_.1} parent=11 // pred_check
          %p680 = pneg %p530
        $region90: #{_lambda_.1} parent=11 // pred_check_branch
          %682 = sbr.rel (%p680) target = $region92
        $region91: #{_lambda_.1} parent=11 // pred_region
          _
        $region92: #{_lambda_.1} parent=11 // pred_fallthru
          _
      $region12: #{_lambda_.1} parent=5 // pred_fallthru
        _
      %p683 = scmp.lt.s32.totalorder %s32, 3
      // Predicated region
      $region93: #{_lambda_.1} parent=5 // pred_check
        %p684 = pneg %p683
      $region94: #{_lambda_.1} parent=5 // pred_check_branch
        %686 = sbr.rel (%p684) target = $region96
      $region95: #{_lambda_.1} parent=5 // pred_region
        // Predicated region
        $region97: #{_lambda_.1} parent=95 // pred_check
          %p687 = pneg %p52
        $region98: #{_lambda_.1} parent=95 // pred_check_branch
          %689 = sbr.rel (%p687) target = $region100
        $region99: #{_lambda_.1} parent=95 // pred_region
          %s690 = sand.u32 %s42, 1
          %s691 = sand.u32 %s42, 1
          %s692 = smul.addr %s691, 64
          %s693 = scalar_lea.vmem [#allocation4], %s692
          %s694 = smul.addr %s32, 8
          %s695 = scalar_lea.vmem %s0, %s694
          // Predicated region
          $region101: #{_lambda_.1} parent=99 // pred_check
            _
          $region102: #{_lambda_.1} parent=99 // pred_check_branch
            %697 = sbr.rel (0) target = $region104
          $region103: #{_lambda_.1} parent=99 // pred_region
            // Predicated region
            $region105: #{_lambda_.1} parent=103 // pred_check
              _
            $region106: #{_lambda_.1} parent=103 // pred_check_branch
              %699 = sbr.rel (0) target = $region108
            $region107: #{_lambda_.1} parent=103 // pred_region
              // Predicated region
              $region120: #{_lambda_.1} parent=107 // pred_check
                _
              $region121: #{_lambda_.1} parent=107 // pred_check_branch
                %729 = sbr.rel (0) target = $region123
              $region122: #{_lambda_.1} parent=107 // pred_region
                loop: start=0, step=1, limit=1
                $region124: #{_lambda_.1} parent=122 // loop_pre_header
                  _
                $region125: #{_lambda_.1} parent=122 // loop_header
                  %s731 = sphi 0, %s735
                  %p732 = scmp.ge.s32.totalorder %s731, 1
                  %s736 = sphi %s695, %s695
                  %s737 = sphi %s693, %s693
                $region126: #{_lambda_.1} parent=122 // loop_header_branch
                  %734 = sbr.rel (%p732) target = $region130
                $region127: #{_lambda_.1} parent=122 // loop_body
                  %v738 = vld [vmem:[%s736] sm:$0xff]
                  %739 = vst [vmem:[%s737] sm:$0xff] %v738
                  %v740 = vld [vmem:[%s736 + $0x18] sm:$0xff]
                  %741 = vst [vmem:[%s737 + $0x8] sm:$0xff] %v740
                  %v742 = vld [vmem:[%s736 + $0x30] sm:$0xff]
                  %743 = vst [vmem:[%s737 + $0x10] sm:$0xff] %v742
                  %v744 = vld [vmem:[%s736 + $0x48] sm:$0xff]
                  %745 = vst [vmem:[%s737 + $0x18] sm:$0xff] %v744
                  %v746 = vld [vmem:[%s736 + $0x60] sm:$0xff]
                  %747 = vst [vmem:[%s737 + $0x20] sm:$0xff] %v746
                  %v748 = vld [vmem:[%s736 + $0x78] sm:$0xff]
                  %749 = vst [vmem:[%s737 + $0x28] sm:$0xff] %v748
                  %v750 = vld [vmem:[%s736 + $0x90] sm:$0xff]
                  %751 = vst [vmem:[%s737 + $0x30] sm:$0xff] %v750
                  %v752 = vld [vmem:[%s736 + $0xa8] sm:$0xff]
                  %753 = vst [vmem:[%s737 + $0x38] sm:$0xff] %v752
                $region128: #{_lambda_.1} parent=122 // loop_footer
                  %s735 = sadd.s32 1, %s731
                $region129: #{_lambda_.1} parent=122 // loop_footer_branch
                  %730 = sbr.rel target = $region125
                $region130: #{_lambda_.1} parent=122 // loop_exit
                  _
              $region123: #{_lambda_.1} parent=107 // pred_fallthru
                _
              // Predicated region
              $region131: #{_lambda_.1} parent=107 // pred_check
                _
              $region132: #{_lambda_.1} parent=107 // pred_check_branch
                %755 = sbr.rel target = $region134
              $region133: #{_lambda_.1} parent=107 // pred_region
                _
              $region134: #{_lambda_.1} parent=107 // pred_fallthru
                _
            $region108: #{_lambda_.1} parent=103 // pred_fallthru
              _
            // Predicated region
            $region109: #{_lambda_.1} parent=103 // pred_check
              _
            $region110: #{_lambda_.1} parent=103 // pred_check_branch
              %701 = sbr.rel target = $region112
            $region111: #{_lambda_.1} parent=103 // pred_region
              %s703 = ssub.s32 256, 1
              loop: start=0, step=1, limit=1
              $region113: #{_lambda_.1} parent=111 // loop_pre_header
                _
              $region114: #{_lambda_.1} parent=111 // loop_header
                %s705 = sphi 0, %s709
                %p706 = scmp.ge.s32.totalorder %s705, 1
                %s710 = sphi %s695, %s695
                %s711 = sphi %s693, %s693
              $region115: #{_lambda_.1} parent=111 // loop_header_branch
                %708 = sbr.rel (%p706) target = $region119
              $region116: #{_lambda_.1} parent=111 // loop_body
                %v712 = vld [vmem:[%s710] sm:%s703]
                %713 = vst [vmem:[%s711] sm:%s703] %v712
                %v714 = vld [vmem:[%s710 + $0x18] sm:%s703]
                %715 = vst [vmem:[%s711 + $0x8] sm:%s703] %v714
                %v716 = vld [vmem:[%s710 + $0x30] sm:%s703]
                %717 = vst [vmem:[%s711 + $0x10] sm:%s703] %v716
                %v718 = vld [vmem:[%s710 + $0x48] sm:%s703]
                %719 = vst [vmem:[%s711 + $0x18] sm:%s703] %v718
                %v720 = vld [vmem:[%s710 + $0x60] sm:%s703]
                %721 = vst [vmem:[%s711 + $0x20] sm:%s703] %v720
                %v722 = vld [vmem:[%s710 + $0x78] sm:%s703]
                %723 = vst [vmem:[%s711 + $0x28] sm:%s703] %v722
                %v724 = vld [vmem:[%s710 + $0x90] sm:%s703]
                %725 = vst [vmem:[%s711 + $0x30] sm:%s703] %v724
                %v726 = vld [vmem:[%s710 + $0xa8] sm:%s703]
                %727 = vst [vmem:[%s711 + $0x38] sm:%s703] %v726
              $region117: #{_lambda_.1} parent=111 // loop_footer
                %s709 = sadd.s32 1, %s705
              $region118: #{_lambda_.1} parent=111 // loop_footer_branch
                %704 = sbr.rel target = $region114
              $region119: #{_lambda_.1} parent=111 // loop_exit
                _
            $region112: #{_lambda_.1} parent=103 // pred_fallthru
              _
          $region104: #{_lambda_.1} parent=99 // pred_fallthru
            _
          %756 = vnop
        $region100: #{_lambda_.1} parent=95 // pred_fallthru
          _
        // Predicated region
        $region135: #{_lambda_.1} parent=95 // pred_check
          %p757 = pneg %p78
        $region136: #{_lambda_.1} parent=95 // pred_check_branch
          %759 = sbr.rel (%p757) target = $region138
        $region137: #{_lambda_.1} parent=95 // pred_region
          %s760 = sand.u32 %s68, 1
          %s761 = sand.u32 %s68, 1
          %s762 = smul.addr %s761, 64
          %s763 = scalar_lea.vmem [#allocation5], %s762
          %s764 = smul.addr %s32, 8
          %s765 = scalar_lea.vmem %s1, %s764
          // Predicated region
          $region139: #{_lambda_.1} parent=137 // pred_check
            _
          $region140: #{_lambda_.1} parent=137 // pred_check_branch
            %767 = sbr.rel (0) target = $region142
          $region141: #{_lambda_.1} parent=137 // pred_region
            // Predicated region
            $region143: #{_lambda_.1} parent=141 // pred_check
              _
            $region144: #{_lambda_.1} parent=141 // pred_check_branch
              %769 = sbr.rel (0) target = $region146
            $region145: #{_lambda_.1} parent=141 // pred_region
              // Predicated region
              $region158: #{_lambda_.1} parent=145 // pred_check
                _
              $region159: #{_lambda_.1} parent=145 // pred_check_branch
                %799 = sbr.rel (0) target = $region161
              $region160: #{_lambda_.1} parent=145 // pred_region
                loop: start=0, step=1, limit=1
                $region162: #{_lambda_.1} parent=160 // loop_pre_header
                  _
                $region163: #{_lambda_.1} parent=160 // loop_header
                  %s801 = sphi 0, %s805
                  %p802 = scmp.ge.s32.totalorder %s801, 1
                  %s806 = sphi %s765, %s765
                  %s807 = sphi %s763, %s763
                $region164: #{_lambda_.1} parent=160 // loop_header_branch
                  %804 = sbr.rel (%p802) target = $region168
                $region165: #{_lambda_.1} parent=160 // loop_body
                  %v808 = vld [vmem:[%s806] sm:$0xff]
                  %809 = vst [vmem:[%s807] sm:$0xff] %v808
                  %v810 = vld [vmem:[%s806 + $0x18] sm:$0xff]
                  %811 = vst [vmem:[%s807 + $0x8] sm:$0xff] %v810
                  %v812 = vld [vmem:[%s806 + $0x30] sm:$0xff]
                  %813 = vst [vmem:[%s807 + $0x10] sm:$0xff] %v812
                  %v814 = vld [vmem:[%s806 + $0x48] sm:$0xff]
                  %815 = vst [vmem:[%s807 + $0x18] sm:$0xff] %v814
                  %v816 = vld [vmem:[%s806 + $0x60] sm:$0xff]
                  %817 = vst [vmem:[%s807 + $0x20] sm:$0xff] %v816
                  %v818 = vld [vmem:[%s806 + $0x78] sm:$0xff]
                  %819 = vst [vmem:[%s807 + $0x28] sm:$0xff] %v818
                  %v820 = vld [vmem:[%s806 + $0x90] sm:$0xff]
                  %821 = vst [vmem:[%s807 + $0x30] sm:$0xff] %v820
                  %v822 = vld [vmem:[%s806 + $0xa8] sm:$0xff]
                  %823 = vst [vmem:[%s807 + $0x38] sm:$0xff] %v822
                $region166: #{_lambda_.1} parent=160 // loop_footer
                  %s805 = sadd.s32 1, %s801
                $region167: #{_lambda_.1} parent=160 // loop_footer_branch
                  %800 = sbr.rel target = $region163
                $region168: #{_lambda_.1} parent=160 // loop_exit
                  _
              $region161: #{_lambda_.1} parent=145 // pred_fallthru
                _
              // Predicated region
              $region169: #{_lambda_.1} parent=145 // pred_check
                _
              $region170: #{_lambda_.1} parent=145 // pred_check_branch
                %825 = sbr.rel target = $region172
              $region171: #{_lambda_.1} parent=145 // pred_region
                _
              $region172: #{_lambda_.1} parent=145 // pred_fallthru
                _
            $region146: #{_lambda_.1} parent=141 // pred_fallthru
              _
            // Predicated region
            $region147: #{_lambda_.1} parent=141 // pred_check
              _
            $region148: #{_lambda_.1} parent=141 // pred_check_branch
              %771 = sbr.rel target = $region150
            $region149: #{_lambda_.1} parent=141 // pred_region
              %s773 = ssub.s32 256, 1
              loop: start=0, step=1, limit=1
              $region151: #{_lambda_.1} parent=149 // loop_pre_header
                _
              $region152: #{_lambda_.1} parent=149 // loop_header
                %s775 = sphi 0, %s779
                %p776 = scmp.ge.s32.totalorder %s775, 1
                %s780 = sphi %s765, %s765
                %s781 = sphi %s763, %s763
              $region153: #{_lambda_.1} parent=149 // loop_header_branch
                %778 = sbr.rel (%p776) target = $region157
              $region154: #{_lambda_.1} parent=149 // loop_body
                %v782 = vld [vmem:[%s780] sm:%s773]
                %783 = vst [vmem:[%s781] sm:%s773] %v782
                %v784 = vld [vmem:[%s780 + $0x18] sm:%s773]
                %785 = vst [vmem:[%s781 + $0x8] sm:%s773] %v784
                %v786 = vld [vmem:[%s780 + $0x30] sm:%s773]
                %787 = vst [vmem:[%s781 + $0x10] sm:%s773] %v786
                %v788 = vld [vmem:[%s780 + $0x48] sm:%s773]
                %789 = vst [vmem:[%s781 + $0x18] sm:%s773] %v788
                %v790 = vld [vmem:[%s780 + $0x60] sm:%s773]
                %791 = vst [vmem:[%s781 + $0x20] sm:%s773] %v790
                %v792 = vld [vmem:[%s780 + $0x78] sm:%s773]
                %793 = vst [vmem:[%s781 + $0x28] sm:%s773] %v792
                %v794 = vld [vmem:[%s780 + $0x90] sm:%s773]
                %795 = vst [vmem:[%s781 + $0x30] sm:%s773] %v794
                %v796 = vld [vmem:[%s780 + $0xa8] sm:%s773]
                %797 = vst [vmem:[%s781 + $0x38] sm:%s773] %v796
              $region155: #{_lambda_.1} parent=149 // loop_footer
                %s779 = sadd.s32 1, %s775
              $region156: #{_lambda_.1} parent=149 // loop_footer_branch
                %774 = sbr.rel target = $region152
              $region157: #{_lambda_.1} parent=149 // loop_exit
                _
            $region150: #{_lambda_.1} parent=141 // pred_fallthru
              _
          $region142: #{_lambda_.1} parent=137 // pred_fallthru
            _
          %826 = vnop
        $region138: #{_lambda_.1} parent=95 // pred_fallthru
          _
        // Predicated region
        $region173: #{_lambda_.1} parent=95 // pred_check
          %p827 = pneg %p104
        $region174: #{_lambda_.1} parent=95 // pred_check_branch
          %829 = sbr.rel (%p827) target = $region176
        $region175: #{_lambda_.1} parent=95 // pred_region
          %p830 = scmp.lt.s32.totalorder %s32, 2
          %s831 = scalar_select %p830, %s32, 2
          %s832 = smul.addr %s831, 8
          %s833 = scalar_lea.vmem %s2, %s832
        $region176: #{_lambda_.1} parent=95 // pred_fallthru
          _
      $region96: #{_lambda_.1} parent=5 // pred_fallthru
        _
      %p834 = scmp.le.s32.totalorder 1, %s32
      %p835 = scmp.lt.s32.totalorder %s32, 4
      %p836 = pnand %p834, %p835
      %p837 = pneg %p836
      // Predicated region
      $region177: #{_lambda_.1} parent=5 // pred_check
        _
      $region178: #{_lambda_.1} parent=5 // pred_check_branch
        %839 = sbr.rel (%p836) target = $region180
      $region179: #{_lambda_.1} parent=5 // pred_region
        %s840 = ssub.s32 %s32, 1
        %s841 = sand.u32 %s45, 1
        %s842 = sand.u32 %s45, 1
        %s843 = smul.addr %s842, 64
        %s844 = scalar_lea.vmem [#allocation4], %s843
        // Predicated region
        $region181: #{_lambda_.1} parent=179 // pred_check
          %p845 = pneg %p58
        $region182: #{_lambda_.1} parent=179 // pred_check_branch
          %847 = sbr.rel (%p845) target = $region184
        $region183: #{_lambda_.1} parent=179 // pred_region
          _
        $region184: #{_lambda_.1} parent=179 // pred_fallthru
          _
        %s848 = sand.u32 %s71, 1
        %s849 = sand.u32 %s71, 1
        %s850 = smul.addr %s849, 64
        %s851 = scalar_lea.vmem [#allocation5], %s850
        // Predicated region
        $region185: #{_lambda_.1} parent=179 // pred_check
          %p852 = pneg %p84
        $region186: #{_lambda_.1} parent=179 // pred_check_branch
          %854 = sbr.rel (%p852) target = $region188
        $region187: #{_lambda_.1} parent=179 // pred_region
          _
        $region188: #{_lambda_.1} parent=179 // pred_fallthru
          _
        %s855 = sand.u32 %s45, 1
        %s856 = sand.u32 %s45, 1
        %s857 = smul.addr %s856, 64
        %s858 = scalar_lea.vmem [#allocation4], %s857
        %p859 = pneg %p58
        %p860 = pneg %p55
        %s861 = sand.u32 %s71, 1
        %s862 = sand.u32 %s71, 1
        %s863 = smul.addr %s862, 64
        %s864 = scalar_lea.vmem [#allocation5], %s863
        %p865 = pneg %p84
        %p866 = pneg %p81
        %p867 = scmp.lt.s32.totalorder %s37, 2
        %s868 = scalar_select %p867, %s37, 2
        %s869 = smul.addr %s868, 8
        %s870 = scalar_lea.vmem %s2, %s869
        %p871 = pneg %p110
        %p872 = pneg %p107
        %p873 = pneg %p131
        %p874 = pneg %p128
        %p875 = pneg %p152
        %p876 = pneg %p149
        %p877 = pneg %p173
        %p878 = pneg %p170
        %p879 = pneg %p194
        %p880 = pneg %p191
        %p881 = pneg %p215
        %p882 = pneg %p212
        %p883 = pneg %p236
        %p884 = pneg %p233
        %p885 = pneg %p257
        %p886 = pneg %p254
        %p887 = pneg %p278
        %p888 = pneg %p275
        %p889 = pneg %p299
        %p890 = pneg %p296
        %p891 = pneg %p320
        %p892 = pneg %p317
        %p893 = pneg %p341
        %p894 = pneg %p338
        %p895 = pneg %p362
        %p896 = pneg %p359
        %p897 = pneg %p383
        %p898 = pneg %p380
        %p899 = pneg %p404
        %p900 = pneg %p401
        %p901 = pneg %p425
        %p902 = pneg %p422
        %p903 = pneg %p446
        %p904 = pneg %p443
        %p905 = pneg %p467
        %p906 = pneg %p464
        %p907 = pneg %p488
        %p908 = pneg %p485
        %p909 = pneg %p509
        %p910 = pneg %p506
        %p911 = pneg %p530
        %p912 = pneg %p527
        %p913 = pneg %p556
        %p914 = pneg %p553
        %s915 = sand.u32 %s543, 1
        %s916 = sand.u32 %s543, 1
        %s917 = smul.addr %s916, 64
        %s918 = scalar_lea.vmem [#allocation6], %s917
        %p919 = pneg %p582
        %p920 = pneg %p579
        %p921 = scmp.lt.s32.totalorder %s37, 2
        %s922 = scalar_select %p921, %s37, 2
        %s923 = smul.addr %s922, 8
        %s924 = scalar_lea.vmem %s24, %s923
        %p925 = pneg %p608
        %p926 = pneg %p605
        %s927 = sand.u32 %s595, 1
        %s928 = sand.u32 %s595, 1
        %s929 = smul.addr %s928, 64
        %s930 = scalar_lea.vmem [#allocation7], %s929
        %p931 = scmp.lt.s32.totalorder %s37, 2
        %s932 = scalar_select %p931, %s37, 2
        %s933 = smul.addr %s932, 8
        %s934 = scalar_lea.vmem %s2, %s933
        %p935 = scmp.lt.s32.totalorder %s37, 2
        %s936 = scalar_select %p935, %s37, 2
        %s937 = smul.addr %s936, 8
        %s938 = scalar_lea.vmem %s24, %s937
        %v939 = vld [vmem:[%s844] sm:$0xff]
        %v940 = vld [vmem:[%s844 + $0x8] sm:$0xff]
        %v941 = vld [vmem:[%s844 + $0x10] sm:$0xff]
        %v942 = vld [vmem:[%s844 + $0x18] sm:$0xff]
        %v943 = vld [vmem:[%s844 + $0x20] sm:$0xff]
        %v944 = vld [vmem:[%s844 + $0x28] sm:$0xff]
        %v945 = vld [vmem:[%s844 + $0x30] sm:$0xff]
        %v946 = vld [vmem:[%s844 + $0x38] sm:$0xff]
        %v947 = vld [vmem:[%s3] sm:$0xf]
        %v948 = vld [vmem:[%s4] sm:$0x1]
        %v950 = vperm.slane %v948, 0
        %vm952 = vcmask 31744
        %v954 = vsel %vm952, %v939, 0
        %v957 = vsel %vm952, %v940, 0
        %v960 = vsel %vm952, %v941, 0
        %v963 = vsel %vm952, %v942, 0
        %v966 = vsel %vm952, %v943, 0
        %v969 = vsel %vm952, %v944, 0
        %v972 = vsel %vm952, %v945, 0
        %v975 = vsel %vm952, %v946, 0
        %vm977 = vcmask 1043456
        %v979 = vsel %vm977, %v947, 0
        %981 = vmatpush.msra.mxu0 0.0
        %982 = vmatpush.msra.mxu0 0.0
        %983 = vmatpush.msra.mxu0 0.0
        %984 = vmatpush.msra.mxu0 0.0
        %985 = vmatpush.msra.mxu0 0.0
        %986 = vmatpush.msra.mxu0 0.0
        %987 = vmatpush.msra.mxu0 0.0
        %988 = vmatpush.msra.mxu0 0.0
        %989 = vmatpush.msra.mxu0 0.0
        %990 = vmatpush.msra.mxu0 0.0
        %991 = vmatpush.msra.mxu0 0.0
        %992 = vmatpush.msra.mxu0 0.0
        %993 = vmatpush.msra.mxu0 0.0
        %994 = vmatpush.msra.mxu0 0.0
        %995 = vmatpush.msra.mxu0 0.0
        %996 = vmatpush.msra.mxu0 %v979
        %997 = vmatmul.f32.gmra.mxu0 %v954
        %v998 = vpop.f32.mrf.mxu0
        %v999 = vadd.f32 %v950, %v998
        %1000 = vmatmul.f32.gmra.mxu0 %v957
        %v1001 = vpop.f32.mrf.mxu0
        %v1002 = vadd.f32 %v950, %v1001
        %1003 = vmatmul.f32.gmra.mxu0 %v960
        %v1004 = vpop.f32.mrf.mxu0
        %v1005 = vadd.f32 %v950, %v1004
        %1006 = vmatmul.f32.gmra.mxu0 %v963
        %v1007 = vpop.f32.mrf.mxu0
        %v1008 = vadd.f32 %v950, %v1007
        %1009 = vmatmul.f32.gmra.mxu0 %v966
        %v1010 = vpop.f32.mrf.mxu0
        %v1011 = vadd.f32 %v950, %v1010
        %1012 = vmatmul.f32.gmra.mxu0 %v969
        %v1013 = vpop.f32.mrf.mxu0
        %v1014 = vadd.f32 %v950, %v1013
        %1015 = vmatmul.f32.gmra.mxu0 %v972
        %v1016 = vpop.f32.mrf.mxu0
        %v1017 = vadd.f32 %v950, %v1016
        %1018 = vmatmul.f32.gmra.mxu0 %v975
        %v1019 = vpop.f32.mrf.mxu0
        %v1020 = vadd.f32 %v950, %v1019
        %1021 = vdwg.mxu0
        %v1022 = vmax.f32 %v999, 0.0
        %v1023 = vmax.f32 %v1002, 0.0
        %v1024 = vmax.f32 %v1005, 0.0
        %v1025 = vmax.f32 %v1008, 0.0
        %v1026 = vmax.f32 %v1011, 0.0
        %v1027 = vmax.f32 %v1014, 0.0
        %v1028 = vmax.f32 %v1017, 0.0
        %v1029 = vmax.f32 %v1020, 0.0
        %v1030 = vld [vmem:[%s5] sm:$0xff]
        %v1031 = vld [vmem:[%s5 + $0x8] sm:$0xff]
        %v1032 = vld [vmem:[%s5 + $0x10] sm:$0xff]
        %v1033 = vld [vmem:[%s5 + $0x18] sm:$0xff]
        %v1034 = vld [vmem:[%s6] sm:$0x1]
        %v1036 = vperm.slane %v1034, 0
        %vm1038 = vcmask 261120
        %v1040 = vsel %vm1038, %v1022, 0
        %v1043 = vsel %vm1038, %v1023, 0
        %v1046 = vsel %vm1038, %v1024, 0
        %v1049 = vsel %vm1038, %v1025, 0
        %v1052 = vsel %vm1038, %v1026, 0
        %v1055 = vsel %vm1038, %v1027, 0
        %v1058 = vsel %vm1038, %v1028, 0
        %v1061 = vsel %vm1038, %v1029, 0
        %1063 = vmatpush.msra.mxu0 0.0
        %1064 = vmatpush.msra.mxu0 0.0
        %1065 = vmatpush.msra.mxu0 0.0
        %1066 = vmatpush.msra.mxu0 0.0
        %1067 = vmatpush.msra.mxu0 0.0
        %1068 = vmatpush.msra.mxu0 0.0
        %1069 = vmatpush.msra.mxu0 0.0
        %1070 = vmatpush.msra.mxu0 0.0
        %1071 = vmatpush.msra.mxu0 0.0
        %1072 = vmatpush.msra.mxu0 0.0
        %1073 = vmatpush.msra.mxu0 0.0
        %1074 = vmatpush.msra.mxu0 0.0
        %1075 = vmatpush.msra.mxu0 %v1033
        %1076 = vmatpush.msra.mxu0 %v1032
        %1077 = vmatpush.msra.mxu0 %v1031
        %1078 = vmatpush.msra.mxu0 %v1030
        %1079 = vmatmul.f32.gmra.mxu0 %v1040
        %v1080 = vpop.f32.mrf.mxu0
        %v1081 = vadd.f32 %v1036, %v1080
        %1082 = vmatmul.f32.gmra.mxu0 %v1043
        %v1083 = vpop.f32.mrf.mxu0
        %v1084 = vadd.f32 %v1036, %v1083
        %1085 = vmatmul.f32.gmra.mxu0 %v1046
        %v1086 = vpop.f32.mrf.mxu0
        %v1087 = vadd.f32 %v1036, %v1086
        %1088 = vmatmul.f32.gmra.mxu0 %v1049
        %v1089 = vpop.f32.mrf.mxu0
        %v1090 = vadd.f32 %v1036, %v1089
        %1091 = vmatmul.f32.gmra.mxu0 %v1052
        %v1092 = vpop.f32.mrf.mxu0
        %v1093 = vadd.f32 %v1036, %v1092
        %1094 = vmatmul.f32.gmra.mxu0 %v1055
        %v1095 = vpop.f32.mrf.mxu0
        %v1096 = vadd.f32 %v1036, %v1095
        %1097 = vmatmul.f32.gmra.mxu0 %v1058
        %v1098 = vpop.f32.mrf.mxu0
        %v1099 = vadd.f32 %v1036, %v1098
        %1100 = vmatmul.f32.gmra.mxu0 %v1061
        %v1101 = vpop.f32.mrf.mxu0
        %v1102 = vadd.f32 %v1036, %v1101
        %1103 = vdwg.mxu0
        %v1104 = vmax.f32 %v1081, 0.0
        %v1105 = vmax.f32 %v1084, 0.0
        %v1106 = vmax.f32 %v1087, 0.0
        %v1107 = vmax.f32 %v1090, 0.0
        %v1108 = vmax.f32 %v1093, 0.0
        %v1109 = vmax.f32 %v1096, 0.0
        %v1110 = vmax.f32 %v1099, 0.0
        %v1111 = vmax.f32 %v1102, 0.0
        %v1112 = vld [vmem:[%s7] sm:$0xff]
        %v1113 = vld [vmem:[%s7 + $0x8] sm:$0xff]
        %v1114 = vld [vmem:[%s7 + $0x10] sm:$0xff]
        %v1115 = vld [vmem:[%s7 + $0x18] sm:$0xff]
        %v1116 = vld [vmem:[%s8] sm:$0x1]
        %v1118 = vperm.slane %v1116, 0
        %v1121 = vsel %vm1038, %v1104, 0
        %v1124 = vsel %vm1038, %v1105, 0
        %v1127 = vsel %vm1038, %v1106, 0
        %v1130 = vsel %vm1038, %v1107, 0
        %v1133 = vsel %vm1038, %v1108, 0
        %v1136 = vsel %vm1038, %v1109, 0
        %v1139 = vsel %vm1038, %v1110, 0
        %v1142 = vsel %vm1038, %v1111, 0
        %1144 = vmatpush.msra.mxu0 0.0
        %1145 = vmatpush.msra.mxu0 0.0
        %1146 = vmatpush.msra.mxu0 0.0
        %1147 = vmatpush.msra.mxu0 0.0
        %1148 = vmatpush.msra.mxu0 0.0
        %1149 = vmatpush.msra.mxu0 0.0
        %1150 = vmatpush.msra.mxu0 0.0
        %1151 = vmatpush.msra.mxu0 0.0
        %1152 = vmatpush.msra.mxu0 0.0
        %1153 = vmatpush.msra.mxu0 0.0
        %1154 = vmatpush.msra.mxu0 0.0
        %1155 = vmatpush.msra.mxu0 0.0
        %1156 = vmatpush.msra.mxu0 %v1115
        %1157 = vmatpush.msra.mxu0 %v1114
        %1158 = vmatpush.msra.mxu0 %v1113
        %1159 = vmatpush.msra.mxu0 %v1112
        %1160 = vmatmul.f32.gmra.mxu0 %v1121
        %v1161 = vpop.f32.mrf.mxu0
        %v1162 = vadd.f32 %v1118, %v1161
        %1163 = vmatmul.f32.gmra.mxu0 %v1124
        %v1164 = vpop.f32.mrf.mxu0
        %v1165 = vadd.f32 %v1118, %v1164
        %1166 = vmatmul.f32.gmra.mxu0 %v1127
        %v1167 = vpop.f32.mrf.mxu0
        %v1168 = vadd.f32 %v1118, %v1167
        %1169 = vmatmul.f32.gmra.mxu0 %v1130
        %v1170 = vpop.f32.mrf.mxu0
        %v1171 = vadd.f32 %v1118, %v1170
        %1172 = vmatmul.f32.gmra.mxu0 %v1133
        %v1173 = vpop.f32.mrf.mxu0
        %v1174 = vadd.f32 %v1118, %v1173
        %1175 = vmatmul.f32.gmra.mxu0 %v1136
        %v1176 = vpop.f32.mrf.mxu0
        %v1177 = vadd.f32 %v1118, %v1176
        %1178 = vmatmul.f32.gmra.mxu0 %v1139
        %v1179 = vpop.f32.mrf.mxu0
        %v1180 = vadd.f32 %v1118, %v1179
        %1181 = vmatmul.f32.gmra.mxu0 %v1142
        %v1182 = vpop.f32.mrf.mxu0
        %v1183 = vadd.f32 %v1118, %v1182
        %1184 = vdwg.mxu0
        %v1185 = vld [vmem:[%s851] sm:$0xff]
        %v1186 = vld [vmem:[%s851 + $0x8] sm:$0xff]
        %v1187 = vld [vmem:[%s851 + $0x10] sm:$0xff]
        %v1188 = vld [vmem:[%s851 + $0x18] sm:$0xff]
        %v1189 = vld [vmem:[%s851 + $0x20] sm:$0xff]
        %v1190 = vld [vmem:[%s851 + $0x28] sm:$0xff]
        %v1191 = vld [vmem:[%s851 + $0x30] sm:$0xff]
        %v1192 = vld [vmem:[%s851 + $0x38] sm:$0xff]
        %v1193 = vmul.f32 %v1162, 0.5
        %v1194 = vmul.f32 %v1165, 0.5
        %v1195 = vmul.f32 %v1168, 0.5
        %v1196 = vmul.f32 %v1171, 0.5
        %v1197 = vmul.f32 %v1174, 0.5
        %v1198 = vmul.f32 %v1177, 0.5
        %v1199 = vmul.f32 %v1180, 0.5
        %v1200 = vmul.f32 %v1183, 0.5
        %v1201 = vmul.f32 %v1193, 1.442695
        %v1202 = vpow.pop %v1201
        %v1203 = vmul.f32 %v1194, 1.442695
        %v1204 = vpow.pop %v1203
        %v1205 = vmul.f32 %v1195, 1.442695
        %v1206 = vpow.pop %v1205
        %v1207 = vmul.f32 %v1196, 1.442695
        %v1208 = vpow.pop %v1207
        %v1209 = vmul.f32 %v1197, 1.442695
        %v1210 = vpow.pop %v1209
        %v1211 = vmul.f32 %v1198, 1.442695
        %v1212 = vpow.pop %v1211
        %v1213 = vmul.f32 %v1199, 1.442695
        %v1214 = vpow.pop %v1213
        %v1215 = vmul.f32 %v1200, 1.442695
        %v1216 = vpow.pop %v1215
        %1225 = vrot.lane.b32.xlu0 %v1202, 120
        %v1226 = vpop.permute.xlu0 %1225
        %1227 = vrot.lane.b32.xlu0 %v1204, 120
        %v1228 = vpop.permute.xlu0 %1227
        %1229 = vrot.lane.b32.xlu0 %v1206, 120
        %v1230 = vpop.permute.xlu0 %1229
        %1231 = vrot.lane.b32.xlu0 %v1208, 120
        %v1232 = vpop.permute.xlu0 %1231
        %1233 = vrot.lane.b32.xlu0 %v1210, 120
        %v1234 = vpop.permute.xlu0 %1233
        %1235 = vrot.lane.b32.xlu0 %v1212, 120
        %v1236 = vpop.permute.xlu0 %1235
        %1237 = vrot.lane.b32.xlu0 %v1214, 120
        %v1238 = vpop.permute.xlu0 %1237
        %1239 = vrot.lane.b32.xlu0 %v1216, 120
        %v1240 = vpop.permute.xlu0 %1239
        %v1249 = vmul.f32 %v1185, %v1226
        %v1250 = vmul.f32 %v1186, %v1228
        %v1251 = vmul.f32 %v1187, %v1230
        %v1252 = vmul.f32 %v1188, %v1232
        %v1253 = vmul.f32 %v1189, %v1234
        %v1254 = vmul.f32 %v1190, %v1236
        %v1255 = vmul.f32 %v1191, %v1238
        %v1256 = vmul.f32 %v1192, %v1240
        %v1257 = vadd.f32 %v1162, %v1249
        %v1258 = vadd.f32 %v1165, %v1250
        %v1259 = vadd.f32 %v1168, %v1251
        %v1260 = vadd.f32 %v1171, %v1252
        %v1261 = vadd.f32 %v1174, %v1253
        %v1262 = vadd.f32 %v1177, %v1254
        %v1263 = vadd.f32 %v1180, %v1255
        %v1264 = vadd.f32 %v1183, %v1256
        %vm1265 = vcmask 130048
        %1266 = vst.msk [vmem:[%s918] sm:$0xff] %vm1265, %v1162
        %1267 = vst.msk [vmem:[%s918 + $0x8] sm:$0xff] %vm1265, %v1165
        %1268 = vst.msk [vmem:[%s918 + $0x10] sm:$0xff] %vm1265, %v1168
        %1269 = vst.msk [vmem:[%s918 + $0x18] sm:$0xff] %vm1265, %v1171
        %1270 = vst.msk [vmem:[%s918 + $0x20] sm:$0xff] %vm1265, %v1174
        %1271 = vst.msk [vmem:[%s918 + $0x28] sm:$0xff] %vm1265, %v1177
        %1272 = vst.msk [vmem:[%s918 + $0x30] sm:$0xff] %vm1265, %v1180
        %1273 = vst.msk [vmem:[%s918 + $0x38] sm:$0xff] %vm1265, %v1183
        %1282 = vrot.lane.b32.xlu0 %v1257, 16
        %v1283 = vpop.permute.xlu0 %1282
        %1284 = vrot.lane.b32.xlu0 %v1258, 16
        %v1285 = vpop.permute.xlu0 %1284
        %1286 = vrot.lane.b32.xlu0 %v1259, 16
        %v1287 = vpop.permute.xlu0 %1286
        %1288 = vrot.lane.b32.xlu0 %v1260, 16
        %v1289 = vpop.permute.xlu0 %1288
        %1290 = vrot.lane.b32.xlu0 %v1261, 16
        %v1291 = vpop.permute.xlu0 %1290
        %1292 = vrot.lane.b32.xlu0 %v1262, 16
        %v1293 = vpop.permute.xlu0 %1292
        %1294 = vrot.lane.b32.xlu0 %v1263, 16
        %v1295 = vpop.permute.xlu0 %1294
        %1296 = vrot.lane.b32.xlu0 %v1264, 16
        %v1297 = vpop.permute.xlu0 %1296
        %vm1306 = vcmask 195712
        %1307 = vst.msk [vmem:[%s918] sm:$0xff] %vm1306, %v1283
        %1308 = vst.msk [vmem:[%s918 + $0x8] sm:$0xff] %vm1306, %v1285
        %1309 = vst.msk [vmem:[%s918 + $0x10] sm:$0xff] %vm1306, %v1287
        %1310 = vst.msk [vmem:[%s918 + $0x18] sm:$0xff] %vm1306, %v1289
        %1311 = vst.msk [vmem:[%s918 + $0x20] sm:$0xff] %vm1306, %v1291
        %1312 = vst.msk [vmem:[%s918 + $0x28] sm:$0xff] %vm1306, %v1293
        %1313 = vst.msk [vmem:[%s918 + $0x30] sm:$0xff] %vm1306, %v1295
        %1314 = vst.msk [vmem:[%s918 + $0x38] sm:$0xff] %vm1306, %v1297
        %vm1315 = vcmask 64512
        %1316 = vst.msk [vmem:[#allocation2] sm:$0xff] %vm1315, %v1257
        %1317 = vrot.lane.b32.xlu0 %v1258, 8
        %v1318 = vpop.permute.xlu0 %1317
        %vm1320 = vcmask 130112
        %1321 = vst.msk [vmem:[#allocation2] sm:$0xff] %vm1320, %v1318
        %1322 = vst.msk [vmem:[#allocation2] sm:$0xff] %vm1306, %v1287
        %1323 = vrot.lane.b32.xlu0 %v1260, 24
        %v1324 = vpop.permute.xlu0 %1323
        %vm1326 = vcmask 261312
        %1327 = vst.msk [vmem:[#allocation2] sm:$0xff] %vm1326, %v1324
        %1328 = vrot.lane.b32.xlu0 %v1261, 32
        %v1329 = vpop.permute.xlu0 %1328
        %vm1331 = vcmask 326912
        %1332 = vst.msk [vmem:[#allocation2] sm:$0xff] %vm1331, %v1329
        %1333 = vrot.lane.b32.xlu0 %v1262, 40
        %v1334 = vpop.permute.xlu0 %1333
        %vm1336 = vcmask 392512
        %1337 = vst.msk [vmem:[#allocation2] sm:$0xff] %vm1336, %v1334
        %1338 = vrot.lane.b32.xlu0 %v1263, 48
        %v1339 = vpop.permute.xlu0 %1338
        %vm1341 = vcmask 458112
        %1342 = vst.msk [vmem:[#allocation2] sm:$0xff] %vm1341, %v1339
        %1343 = vrot.lane.b32.xlu0 %v1264, 56
        %v1344 = vpop.permute.xlu0 %1343
        %vm1346 = vcmask 523712
        %1347 = vst.msk [vmem:[#allocation2] sm:$0xff] %vm1346, %v1344
        %v1348 = vld [vmem:[#allocation2] sm:$0xff]
        %v1349 = vld [vmem:[%s9] sm:$0xff]
        %v1350 = vld [vmem:[%s9 + $0x8] sm:$0xff]
        %v1351 = vld [vmem:[%s9 + $0x10] sm:$0xff]
        %v1352 = vld [vmem:[%s9 + $0x18] sm:$0xff]
        %v1353 = vld [vmem:[%s9 + $0x20] sm:$0xff]
        %v1354 = vld [vmem:[%s9 + $0x28] sm:$0xff]
        %v1355 = vld [vmem:[%s9 + $0x30] sm:$0xff]
        %v1356 = vld [vmem:[%s9 + $0x38] sm:$0xff]
        %v1357 = vld [vmem:[%s10] sm:$0x1]
        %v1359 = vperm.slane %v1357, 0
        %vm1361 = vcmask 523264
        %v1363 = vsel %vm1361, %v1348, 0
        %1365 = vmatpush.msra.mxu0 0.0
        %1366 = vmatpush.msra.mxu0 0.0
        %1367 = vmatpush.msra.mxu0 0.0
        %1368 = vmatpush.msra.mxu0 0.0
        %1369 = vmatpush.msra.mxu0 0.0
        %1370 = vmatpush.msra.mxu0 0.0
        %1371 = vmatpush.msra.mxu0 0.0
        %1372 = vmatpush.msra.mxu0 0.0
        %1373 = vmatpush.msra.mxu0 %v1356
        %1374 = vmatpush.msra.mxu0 %v1355
        %1375 = vmatpush.msra.mxu0 %v1354
        %1376 = vmatpush.msra.mxu0 %v1353
        %1377 = vmatpush.msra.mxu0 %v1352
        %1378 = vmatpush.msra.mxu0 %v1351
        %1379 = vmatpush.msra.mxu0 %v1350
        %1380 = vmatpush.msra.mxu0 %v1349
        %1381 = vmatmul.f32.gmra.mxu0 %v1363
        %v1382 = vpop.f32.mrf.mxu0
        %v1383 = vadd.f32 %v1359, %v1382
        %1384 = vdwg.mxu0
        %v1385 = vmax.f32 %v1383, 0.0
        %v1386 = vld [vmem:[%s11] sm:$0xff]
        %v1387 = vld [vmem:[%s11 + $0x8] sm:$0xff]
        %v1388 = vld [vmem:[%s11 + $0x10] sm:$0xff]
        %v1389 = vld [vmem:[%s11 + $0x18] sm:$0xff]
        %v1390 = vld [vmem:[%s12] sm:$0x1]
        %v1392 = vperm.slane %v1390, 0
        %v1395 = vsel %vm1038, %v1385, 0
        %1397 = vmatpush.msra.mxu0 0.0
        %1398 = vmatpush.msra.mxu0 0.0
        %1399 = vmatpush.msra.mxu0 0.0
        %1400 = vmatpush.msra.mxu0 0.0
        %1401 = vmatpush.msra.mxu0 0.0
        %1402 = vmatpush.msra.mxu0 0.0
        %1403 = vmatpush.msra.mxu0 0.0
        %1404 = vmatpush.msra.mxu0 0.0
        %1405 = vmatpush.msra.mxu0 0.0
        %1406 = vmatpush.msra.mxu0 0.0
        %1407 = vmatpush.msra.mxu0 0.0
        %1408 = vmatpush.msra.mxu0 0.0
        %1409 = vmatpush.msra.mxu0 %v1389
        %1410 = vmatpush.msra.mxu0 %v1388
        %1411 = vmatpush.msra.mxu0 %v1387
        %1412 = vmatpush.msra.mxu0 %v1386
        %1413 = vmatmul.f32.gmra.mxu0 %v1395
        %v1414 = vpop.f32.mrf.mxu0
        %v1415 = vadd.f32 %v1392, %v1414
        %1416 = vdwg.mxu0
        %v1417 = vmax.f32 %v1415, 0.0
        %v1418 = vld [vmem:[%s13] sm:$0xff]
        %v1419 = vld [vmem:[%s13 + $0x8] sm:$0xff]
        %v1420 = vld [vmem:[%s13 + $0x10] sm:$0xff]
        %v1421 = vld [vmem:[%s13 + $0x18] sm:$0xff]
        %v1422 = vld [vmem:[%s14] sm:$0x1]
        %v1424 = vperm.slane %v1422, 0
        %v1427 = vsel %vm1038, %v1417, 0
        %1429 = vmatpush.msra.mxu0 0.0
        %1430 = vmatpush.msra.mxu0 0.0
        %1431 = vmatpush.msra.mxu0 0.0
        %1432 = vmatpush.msra.mxu0 0.0
        %1433 = vmatpush.msra.mxu0 0.0
        %1434 = vmatpush.msra.mxu0 0.0
        %1435 = vmatpush.msra.mxu0 0.0
        %1436 = vmatpush.msra.mxu0 0.0
        %1437 = vmatpush.msra.mxu0 0.0
        %1438 = vmatpush.msra.mxu0 0.0
        %1439 = vmatpush.msra.mxu0 0.0
        %1440 = vmatpush.msra.mxu0 0.0
        %1441 = vmatpush.msra.mxu0 %v1421
        %1442 = vmatpush.msra.mxu0 %v1420
        %1443 = vmatpush.msra.mxu0 %v1419
        %1444 = vmatpush.msra.mxu0 %v1418
        %1445 = vmatmul.f32.gmra.mxu0 %v1427
        %v1446 = vpop.f32.mrf.mxu0
        %v1447 = vadd.f32 %v1424, %v1446
        %1448 = vdwg.mxu0
        %v1449 = vld [vmem:[%s934] sm:$0xff]
        %v1450 = vmul.f32 %v1447, 0.5
        %v1451 = vmul.f32 %v1450, 1.442695
        %v1452 = vpow.pop %v1451
        %1454 = vrot.lane.b32.xlu0 %v1452, 112
        %v1455 = vpop.permute.xlu0 %1454
        %v1457 = vmul.f32 %v1449, %v1455
        %v1458 = vadd.f32 %v1447, %v1457
        %1459 = vst.msk [vmem:[%s938] sm:$0xff] %vm1038, %v1447
        %1461 = vrot.lane.b32.xlu0 %v1458, 32
        %v1462 = vpop.permute.xlu0 %1461
        %vm1464 = vcmask 392448
        %1465 = vst.msk [vmem:[%s938] sm:$0xff] %vm1464, %v1462
        %v1466 = vld [vmem:[%s15] sm:$0xff]
        %v1467 = vld [vmem:[%s15 + $0x8] sm:$0xff]
        %v1468 = vld [vmem:[%s16] sm:$0x1]
        %v1470 = vperm.slane %v1468, 0
        %v1472 = vsel %vm1265, %v1458, 0
        %1474 = vmatpush.msra.mxu0 0.0
        %1475 = vmatpush.msra.mxu0 0.0
        %1476 = vmatpush.msra.mxu0 0.0
        %1477 = vmatpush.msra.mxu0 0.0
        %1478 = vmatpush.msra.mxu0 0.0
        %1479 = vmatpush.msra.mxu0 0.0
        %1480 = vmatpush.msra.mxu0 0.0
        %1481 = vmatpush.msra.mxu0 0.0
        %1482 = vmatpush.msra.mxu0 0.0
        %1483 = vmatpush.msra.mxu0 0.0
        %1484 = vmatpush.msra.mxu0 0.0
        %1485 = vmatpush.msra.mxu0 0.0
        %1486 = vmatpush.msra.mxu0 0.0
        %1487 = vmatpush.msra.mxu0 0.0
        %1488 = vmatpush.msra.mxu0 %v1467
        %1489 = vmatpush.msra.mxu0 %v1466
        %1490 = vmatmul.f32.gmra.mxu0 %v1472
        %v1491 = vpop.f32.mrf.mxu0
        %v1492 = vadd.f32 %v1470, %v1491
        %1493 = vdwg.mxu0
        %v1494 = vmax.f32 %v1492, 0.0
        %v1495 = vld [vmem:[%s17] sm:$0xff]
        %v1496 = vld [vmem:[%s17 + $0x8] sm:$0xff]
        %v1497 = vld [vmem:[%s17 + $0x10] sm:$0xff]
        %v1498 = vld [vmem:[%s17 + $0x18] sm:$0xff]
        %v1499 = vld [vmem:[%s18] sm:$0x1]
        %v1501 = vperm.slane %v1499, 0
        %v1504 = vsel %vm1038, %v1494, 0
        %1506 = vmatpush.msra.mxu0 0.0
        %1507 = vmatpush.msra.mxu0 0.0
        %1508 = vmatpush.msra.mxu0 0.0
        %1509 = vmatpush.msra.mxu0 0.0
        %1510 = vmatpush.msra.mxu0 0.0
        %1511 = vmatpush.msra.mxu0 0.0
        %1512 = vmatpush.msra.mxu0 0.0
        %1513 = vmatpush.msra.mxu0 0.0
        %1514 = vmatpush.msra.mxu0 0.0
        %1515 = vmatpush.msra.mxu0 0.0
        %1516 = vmatpush.msra.mxu0 0.0
        %1517 = vmatpush.msra.mxu0 0.0
        %1518 = vmatpush.msra.mxu0 %v1498
        %1519 = vmatpush.msra.mxu0 %v1497
        %1520 = vmatpush.msra.mxu0 %v1496
        %1521 = vmatpush.msra.mxu0 %v1495
        %1522 = vmatmul.f32.gmra.mxu0 %v1504
        %v1523 = vpop.f32.mrf.mxu0
        %v1524 = vadd.f32 %v1501, %v1523
        %1525 = vdwg.mxu0
        %1526 = vst.msk [vmem:[#allocation3] sm:$0xff] %vm1315, %v1524
        %1528 = vrot.lane.b32.xlu0 %v1524, 120
        %v1529 = vpop.permute.xlu0 %1528
        %s1531 = scalar_lea.vmem [#allocation3], 8
        %1532 = vst.msk [vmem:[%s1531] sm:$0xff] %vm1315, %v1529
        %1533 = vrot.lane.b32.xlu0 %v1524, 112
        %v1534 = vpop.permute.xlu0 %1533
        %s1536 = scalar_lea.vmem [#allocation3], 16
        %1537 = vst.msk [vmem:[%s1536] sm:$0xff] %vm1315, %v1534
        %1538 = vrot.lane.b32.xlu0 %v1524, 104
        %v1539 = vpop.permute.xlu0 %1538
        %s1541 = scalar_lea.vmem [#allocation3], 24
        %1542 = vst.msk [vmem:[%s1541] sm:$0xff] %vm1315, %v1539
        %1543 = vrot.lane.b32.xlu0 %v1524, 96
        %v1544 = vpop.permute.xlu0 %1543
        %s1546 = scalar_lea.vmem [#allocation3], 32
        %1547 = vst.msk [vmem:[%s1546] sm:$0xff] %vm1315, %v1544
        %1548 = vrot.lane.b32.xlu0 %v1524, 88
        %v1549 = vpop.permute.xlu0 %1548
        %s1551 = scalar_lea.vmem [#allocation3], 40
        %1552 = vst.msk [vmem:[%s1551] sm:$0xff] %vm1315, %v1549
        %1553 = vrot.lane.b32.xlu0 %v1524, 80
        %v1554 = vpop.permute.xlu0 %1553
        %s1556 = scalar_lea.vmem [#allocation3], 48
        %1557 = vst.msk [vmem:[%s1556] sm:$0xff] %vm1315, %v1554
        %1558 = vrot.lane.b32.xlu0 %v1524, 72
        %v1559 = vpop.permute.xlu0 %1558
        %s1561 = scalar_lea.vmem [#allocation3], 56
        %1562 = vst.msk [vmem:[%s1561] sm:$0xff] %vm1315, %v1559
        %v1563 = vld [vmem:[#allocation3] sm:$0xff]
        %v1564 = vld [vmem:[#allocation3 + $0x8] sm:$0xff]
        %v1565 = vld [vmem:[#allocation3 + $0x10] sm:$0xff]
        %v1566 = vld [vmem:[#allocation3 + $0x18] sm:$0xff]
        %v1567 = vld [vmem:[#allocation3 + $0x20] sm:$0xff]
        %v1568 = vld [vmem:[#allocation3 + $0x28] sm:$0xff]
        %v1569 = vld [vmem:[#allocation3 + $0x30] sm:$0xff]
        %v1570 = vld [vmem:[#allocation3 + $0x38] sm:$0xff]
        %v1571 = vld [vmem:[%s19] sm:$0xff]
        %v1572 = vld [vmem:[%s20] sm:$0x1]
        %v1574 = vperm.slane %v1572, 0
        %v1577 = vsel %vm1315, %v1563, 0
        %v1580 = vsel %vm1315, %v1564, 0
        %v1583 = vsel %vm1315, %v1565, 0
        %v1586 = vsel %vm1315, %v1566, 0
        %v1589 = vsel %vm1315, %v1567, 0
        %v1592 = vsel %vm1315, %v1568, 0
        %v1595 = vsel %vm1315, %v1569, 0
        %v1598 = vsel %vm1315, %v1570, 0
        %1600 = vmatpush.msra.mxu0 0.0
        %1601 = vmatpush.msra.mxu0 0.0
        %1602 = vmatpush.msra.mxu0 0.0
        %1603 = vmatpush.msra.mxu0 0.0
        %1604 = vmatpush.msra.mxu0 0.0
        %1605 = vmatpush.msra.mxu0 0.0
        %1606 = vmatpush.msra.mxu0 0.0
        %1607 = vmatpush.msra.mxu0 0.0
        %1608 = vmatpush.msra.mxu0 0.0
        %1609 = vmatpush.msra.mxu0 0.0
        %1610 = vmatpush.msra.mxu0 0.0
        %1611 = vmatpush.msra.mxu0 0.0
        %1612 = vmatpush.msra.mxu0 0.0
        %1613 = vmatpush.msra.mxu0 0.0
        %1614 = vmatpush.msra.mxu0 0.0
        %1615 = vmatpush.msra.mxu0 %v1571
        %1616 = vmatmul.f32.gmra.mxu0 %v1577
        %v1617 = vpop.f32.mrf.mxu0
        %v1618 = vadd.f32 %v1574, %v1617
        %1619 = vmatmul.f32.gmra.mxu0 %v1580
        %v1620 = vpop.f32.mrf.mxu0
        %v1621 = vadd.f32 %v1574, %v1620
        %1622 = vmatmul.f32.gmra.mxu0 %v1583
        %v1623 = vpop.f32.mrf.mxu0
        %v1624 = vadd.f32 %v1574, %v1623
        %1625 = vmatmul.f32.gmra.mxu0 %v1586
        %v1626 = vpop.f32.mrf.mxu0
        %v1627 = vadd.f32 %v1574, %v1626
        %1628 = vmatmul.f32.gmra.mxu0 %v1589
        %v1629 = vpop.f32.mrf.mxu0
        %v1630 = vadd.f32 %v1574, %v1629
        %1631 = vmatmul.f32.gmra.mxu0 %v1592
        %v1632 = vpop.f32.mrf.mxu0
        %v1633 = vadd.f32 %v1574, %v1632
        %1634 = vmatmul.f32.gmra.mxu0 %v1595
        %v1635 = vpop.f32.mrf.mxu0
        %v1636 = vadd.f32 %v1574, %v1635
        %1637 = vmatmul.f32.gmra.mxu0 %v1598
        %v1638 = vpop.f32.mrf.mxu0
        %v1639 = vadd.f32 %v1574, %v1638
        %1640 = vdwg.mxu0
        %v1641 = vmax.f32 %v1618, 0.0
        %v1642 = vmax.f32 %v1621, 0.0
        %v1643 = vmax.f32 %v1624, 0.0
        %v1644 = vmax.f32 %v1627, 0.0
        %v1645 = vmax.f32 %v1630, 0.0
        %v1646 = vmax.f32 %v1633, 0.0
        %v1647 = vmax.f32 %v1636, 0.0
        %v1648 = vmax.f32 %v1639, 0.0
        %v1649 = vld [vmem:[%s21] sm:$0xff]
        %v1650 = vld [vmem:[%s21 + $0x8] sm:$0xff]
        %v1651 = vld [vmem:[%s21 + $0x10] sm:$0xff]
        %v1652 = vld [vmem:[%s21 + $0x18] sm:$0xff]
        %v1653 = vld [vmem:[%s22] sm:$0x1]
        %v1655 = vperm.slane %v1653, 0
        %v1658 = vsel %vm1038, %v1641, 0
        %v1661 = vsel %vm1038, %v1642, 0
        %v1664 = vsel %vm1038, %v1643, 0
        %v1667 = vsel %vm1038, %v1644, 0
        %v1670 = vsel %vm1038, %v1645, 0
        %v1673 = vsel %vm1038, %v1646, 0
        %v1676 = vsel %vm1038, %v1647, 0
        %v1679 = vsel %vm1038, %v1648, 0
        %1681 = vmatpush.msra.mxu0 0.0
        %1682 = vmatpush.msra.mxu0 0.0
        %1683 = vmatpush.msra.mxu0 0.0
        %1684 = vmatpush.msra.mxu0 0.0
        %1685 = vmatpush.msra.mxu0 0.0
        %1686 = vmatpush.msra.mxu0 0.0
        %1687 = vmatpush.msra.mxu0 0.0
        %1688 = vmatpush.msra.mxu0 0.0
        %1689 = vmatpush.msra.mxu0 0.0
        %1690 = vmatpush.msra.mxu0 0.0
        %1691 = vmatpush.msra.mxu0 0.0
        %1692 = vmatpush.msra.mxu0 0.0
        %1693 = vmatpush.msra.mxu0 %v1652
        %1694 = vmatpush.msra.mxu0 %v1651
        %1695 = vmatpush.msra.mxu0 %v1650
        %1696 = vmatpush.msra.mxu0 %v1649
        %1697 = vmatmul.f32.gmra.mxu0 %v1658
        %v1698 = vpop.f32.mrf.mxu0
        %v1699 = vadd.f32 %v1655, %v1698
        %1700 = vmatmul.f32.gmra.mxu0 %v1661
        %v1701 = vpop.f32.mrf.mxu0
        %v1702 = vadd.f32 %v1655, %v1701
        %1703 = vmatmul.f32.gmra.mxu0 %v1664
        %v1704 = vpop.f32.mrf.mxu0
        %v1705 = vadd.f32 %v1655, %v1704
        %1706 = vmatmul.f32.gmra.mxu0 %v1667
        %v1707 = vpop.f32.mrf.mxu0
        %v1708 = vadd.f32 %v1655, %v1707
        %1709 = vmatmul.f32.gmra.mxu0 %v1670
        %v1710 = vpop.f32.mrf.mxu0
        %v1711 = vadd.f32 %v1655, %v1710
        %1712 = vmatmul.f32.gmra.mxu0 %v1673
        %v1713 = vpop.f32.mrf.mxu0
        %v1714 = vadd.f32 %v1655, %v1713
        %1715 = vmatmul.f32.gmra.mxu0 %v1676
        %v1716 = vpop.f32.mrf.mxu0
        %v1717 = vadd.f32 %v1655, %v1716
        %1718 = vmatmul.f32.gmra.mxu0 %v1679
        %v1719 = vpop.f32.mrf.mxu0
        %v1720 = vadd.f32 %v1655, %v1719
        %1721 = vdwg.mxu0
        %1722 = vst.msk [vmem:[%s930] sm:$0xff] %vm952, %v1699
        %1723 = vst.msk [vmem:[%s930 + $0x8] sm:$0xff] %vm952, %v1702
        %1724 = vst.msk [vmem:[%s930 + $0x10] sm:$0xff] %vm952, %v1705
        %1725 = vst.msk [vmem:[%s930 + $0x18] sm:$0xff] %vm952, %v1708
        %1726 = vst.msk [vmem:[%s930 + $0x20] sm:$0xff] %vm952, %v1711
        %1727 = vst.msk [vmem:[%s930 + $0x28] sm:$0xff] %vm952, %v1714
        %1728 = vst.msk [vmem:[%s930 + $0x30] sm:$0xff] %vm952, %v1717
        %1729 = vst.msk [vmem:[%s930 + $0x38] sm:$0xff] %vm952, %v1720
        %s1730 = sand.u32 %s543, 1
        %s1731 = sand.u32 %s543, 1
        %s1732 = smul.addr %s1731, 64
        %s1733 = scalar_lea.vmem [#allocation6], %s1732
        %p1734 = scmp.lt.s32.totalorder %s37, 2
        %s1735 = scalar_select %p1734, %s37, 2
        %s1736 = smul.addr %s1735, 8
        %s1737 = scalar_lea.vmem %s24, %s1736
        %s1738 = sand.u32 %s595, 1
        %s1739 = sand.u32 %s595, 1
        %s1740 = smul.addr %s1739, 64
        %s1741 = scalar_lea.vmem [#allocation7], %s1740
        // Predicated region
        $region189: #{_lambda_.1} parent=179 // pred_check
          %p1742 = pneg %p553
        $region190: #{_lambda_.1} parent=179 // pred_check_branch
          %1744 = sbr.rel (%p1742) target = $region192
        $region191: #{_lambda_.1} parent=179 // pred_region
          %s1745 = smul.addr %s37, 8
          %s1746 = scalar_lea.vmem %s23, %s1745
          // Predicated region
          $region193: #{_lambda_.1} parent=191 // pred_check
            _
          $region194: #{_lambda_.1} parent=191 // pred_check_branch
            %1748 = sbr.rel (0) target = $region196
          $region195: #{_lambda_.1} parent=191 // pred_region
            // Predicated region
            $region197: #{_lambda_.1} parent=195 // pred_check
              _
            $region198: #{_lambda_.1} parent=195 // pred_check_branch
              %1750 = sbr.rel (0) target = $region200
            $region199: #{_lambda_.1} parent=195 // pred_region
              // Predicated region
              $region212: #{_lambda_.1} parent=199 // pred_check
                _
              $region213: #{_lambda_.1} parent=199 // pred_check_branch
                %1780 = sbr.rel (0) target = $region215
              $region214: #{_lambda_.1} parent=199 // pred_region
                loop: start=0, step=1, limit=1
                $region216: #{_lambda_.1} parent=214 // loop_pre_header
                  _
                $region217: #{_lambda_.1} parent=214 // loop_header
                  %s1782 = sphi 0, %s1786
                  %p1783 = scmp.ge.s32.totalorder %s1782, 1
                  %s1787 = sphi %s1733, %s1733
                  %s1788 = sphi %s1746, %s1746
                $region218: #{_lambda_.1} parent=214 // loop_header_branch
                  %1785 = sbr.rel (%p1783) target = $region222
                $region219: #{_lambda_.1} parent=214 // loop_body
                  %v1789 = vld [vmem:[%s1787] sm:$0xff]
                  %1790 = vst [vmem:[%s1788] sm:$0xff] %v1789
                  %v1791 = vld [vmem:[%s1787 + $0x8] sm:$0xff]
                  %1792 = vst [vmem:[%s1788 + $0x18] sm:$0xff] %v1791
                  %v1793 = vld [vmem:[%s1787 + $0x10] sm:$0xff]
                  %1794 = vst [vmem:[%s1788 + $0x30] sm:$0xff] %v1793
                  %v1795 = vld [vmem:[%s1787 + $0x18] sm:$0xff]
                  %1796 = vst [vmem:[%s1788 + $0x48] sm:$0xff] %v1795
                  %v1797 = vld [vmem:[%s1787 + $0x20] sm:$0xff]
                  %1798 = vst [vmem:[%s1788 + $0x60] sm:$0xff] %v1797
                  %v1799 = vld [vmem:[%s1787 + $0x28] sm:$0xff]
                  %1800 = vst [vmem:[%s1788 + $0x78] sm:$0xff] %v1799
                  %v1801 = vld [vmem:[%s1787 + $0x30] sm:$0xff]
                  %1802 = vst [vmem:[%s1788 + $0x90] sm:$0xff] %v1801
                  %v1803 = vld [vmem:[%s1787 + $0x38] sm:$0xff]
                  %1804 = vst [vmem:[%s1788 + $0xa8] sm:$0xff] %v1803
                $region220: #{_lambda_.1} parent=214 // loop_footer
                  %s1786 = sadd.s32 1, %s1782
                $region221: #{_lambda_.1} parent=214 // loop_footer_branch
                  %1781 = sbr.rel target = $region217
                $region222: #{_lambda_.1} parent=214 // loop_exit
                  _
              $region215: #{_lambda_.1} parent=199 // pred_fallthru
                _
              // Predicated region
              $region223: #{_lambda_.1} parent=199 // pred_check
                _
              $region224: #{_lambda_.1} parent=199 // pred_check_branch
                %1806 = sbr.rel target = $region226
              $region225: #{_lambda_.1} parent=199 // pred_region
                _
              $region226: #{_lambda_.1} parent=199 // pred_fallthru
                _
            $region200: #{_lambda_.1} parent=195 // pred_fallthru
              _
            // Predicated region
            $region201: #{_lambda_.1} parent=195 // pred_check
              _
            $region202: #{_lambda_.1} parent=195 // pred_check_branch
              %1752 = sbr.rel target = $region204
            $region203: #{_lambda_.1} parent=195 // pred_region
              %s1754 = ssub.s32 256, 1
              loop: start=0, step=1, limit=1
              $region205: #{_lambda_.1} parent=203 // loop_pre_header
                _
              $region206: #{_lambda_.1} parent=203 // loop_header
                %s1756 = sphi 0, %s1760
                %p1757 = scmp.ge.s32.totalorder %s1756, 1
                %s1761 = sphi %s1733, %s1733
                %s1762 = sphi %s1746, %s1746
              $region207: #{_lambda_.1} parent=203 // loop_header_branch
                %1759 = sbr.rel (%p1757) target = $region211
              $region208: #{_lambda_.1} parent=203 // loop_body
                %v1763 = vld [vmem:[%s1761] sm:%s1754]
                %1764 = vst [vmem:[%s1762] sm:%s1754] %v1763
                %v1765 = vld [vmem:[%s1761 + $0x8] sm:%s1754]
                %1766 = vst [vmem:[%s1762 + $0x18] sm:%s1754] %v1765
                %v1767 = vld [vmem:[%s1761 + $0x10] sm:%s1754]
                %1768 = vst [vmem:[%s1762 + $0x30] sm:%s1754] %v1767
                %v1769 = vld [vmem:[%s1761 + $0x18] sm:%s1754]
                %1770 = vst [vmem:[%s1762 + $0x48] sm:%s1754] %v1769
                %v1771 = vld [vmem:[%s1761 + $0x20] sm:%s1754]
                %1772 = vst [vmem:[%s1762 + $0x60] sm:%s1754] %v1771
                %v1773 = vld [vmem:[%s1761 + $0x28] sm:%s1754]
                %1774 = vst [vmem:[%s1762 + $0x78] sm:%s1754] %v1773
                %v1775 = vld [vmem:[%s1761 + $0x30] sm:%s1754]
                %1776 = vst [vmem:[%s1762 + $0x90] sm:%s1754] %v1775
                %v1777 = vld [vmem:[%s1761 + $0x38] sm:%s1754]
                %1778 = vst [vmem:[%s1762 + $0xa8] sm:%s1754] %v1777
              $region209: #{_lambda_.1} parent=203 // loop_footer
                %s1760 = sadd.s32 1, %s1756
              $region210: #{_lambda_.1} parent=203 // loop_footer_branch
                %1755 = sbr.rel target = $region206
              $region211: #{_lambda_.1} parent=203 // loop_exit
                _
            $region204: #{_lambda_.1} parent=195 // pred_fallthru
              _
          $region196: #{_lambda_.1} parent=191 // pred_fallthru
            _
          %1807 = vnop
        $region192: #{_lambda_.1} parent=179 // pred_fallthru
          _
        // Predicated region
        $region227: #{_lambda_.1} parent=179 // pred_check
          %p1808 = pneg %p579
        $region228: #{_lambda_.1} parent=179 // pred_check_branch
          %1810 = sbr.rel (%p1808) target = $region230
        $region229: #{_lambda_.1} parent=179 // pred_region
          _
        $region230: #{_lambda_.1} parent=179 // pred_fallthru
          _
        // Predicated region
        $region231: #{_lambda_.1} parent=179 // pred_check
          %p1811 = pneg %p605
        $region232: #{_lambda_.1} parent=179 // pred_check_branch
          %1813 = sbr.rel (%p1811) target = $region234
        $region233: #{_lambda_.1} parent=179 // pred_region
          %s1814 = smul.addr %s37, 8
          %s1815 = scalar_lea.vmem %s25, %s1814
          // Predicated region
          $region235: #{_lambda_.1} parent=233 // pred_check
            _
          $region236: #{_lambda_.1} parent=233 // pred_check_branch
            %1817 = sbr.rel (0) target = $region238
          $region237: #{_lambda_.1} parent=233 // pred_region
            // Predicated region
            $region239: #{_lambda_.1} parent=237 // pred_check
              _
            $region240: #{_lambda_.1} parent=237 // pred_check_branch
              %1819 = sbr.rel (0) target = $region242
            $region241: #{_lambda_.1} parent=237 // pred_region
              // Predicated region
              $region254: #{_lambda_.1} parent=241 // pred_check
                _
              $region255: #{_lambda_.1} parent=241 // pred_check_branch
                %1849 = sbr.rel (0) target = $region257
              $region256: #{_lambda_.1} parent=241 // pred_region
                loop: start=0, step=1, limit=1
                $region258: #{_lambda_.1} parent=256 // loop_pre_header
                  _
                $region259: #{_lambda_.1} parent=256 // loop_header
                  %s1851 = sphi 0, %s1855
                  %p1852 = scmp.ge.s32.totalorder %s1851, 1
                  %s1856 = sphi %s1741, %s1741
                  %s1857 = sphi %s1815, %s1815
                $region260: #{_lambda_.1} parent=256 // loop_header_branch
                  %1854 = sbr.rel (%p1852) target = $region264
                $region261: #{_lambda_.1} parent=256 // loop_body
                  %v1858 = vld [vmem:[%s1856] sm:$0xff]
                  %1859 = vst [vmem:[%s1857] sm:$0xff] %v1858
                  %v1860 = vld [vmem:[%s1856 + $0x8] sm:$0xff]
                  %1861 = vst [vmem:[%s1857 + $0x18] sm:$0xff] %v1860
                  %v1862 = vld [vmem:[%s1856 + $0x10] sm:$0xff]
                  %1863 = vst [vmem:[%s1857 + $0x30] sm:$0xff] %v1862
                  %v1864 = vld [vmem:[%s1856 + $0x18] sm:$0xff]
                  %1865 = vst [vmem:[%s1857 + $0x48] sm:$0xff] %v1864
                  %v1866 = vld [vmem:[%s1856 + $0x20] sm:$0xff]
                  %1867 = vst [vmem:[%s1857 + $0x60] sm:$0xff] %v1866
                  %v1868 = vld [vmem:[%s1856 + $0x28] sm:$0xff]
                  %1869 = vst [vmem:[%s1857 + $0x78] sm:$0xff] %v1868
                  %v1870 = vld [vmem:[%s1856 + $0x30] sm:$0xff]
                  %1871 = vst [vmem:[%s1857 + $0x90] sm:$0xff] %v1870
                  %v1872 = vld [vmem:[%s1856 + $0x38] sm:$0xff]
                  %1873 = vst [vmem:[%s1857 + $0xa8] sm:$0xff] %v1872
                $region262: #{_lambda_.1} parent=256 // loop_footer
                  %s1855 = sadd.s32 1, %s1851
                $region263: #{_lambda_.1} parent=256 // loop_footer_branch
                  %1850 = sbr.rel target = $region259
                $region264: #{_lambda_.1} parent=256 // loop_exit
                  _
              $region257: #{_lambda_.1} parent=241 // pred_fallthru
                _
              // Predicated region
              $region265: #{_lambda_.1} parent=241 // pred_check
                _
              $region266: #{_lambda_.1} parent=241 // pred_check_branch
                %1875 = sbr.rel target = $region268
              $region267: #{_lambda_.1} parent=241 // pred_region
                _
              $region268: #{_lambda_.1} parent=241 // pred_fallthru
                _
            $region242: #{_lambda_.1} parent=237 // pred_fallthru
              _
            // Predicated region
            $region243: #{_lambda_.1} parent=237 // pred_check
              _
            $region244: #{_lambda_.1} parent=237 // pred_check_branch
              %1821 = sbr.rel target = $region246
            $region245: #{_lambda_.1} parent=237 // pred_region
              %s1823 = ssub.s32 256, 1
              loop: start=0, step=1, limit=1
              $region247: #{_lambda_.1} parent=245 // loop_pre_header
                _
              $region248: #{_lambda_.1} parent=245 // loop_header
                %s1825 = sphi 0, %s1829
                %p1826 = scmp.ge.s32.totalorder %s1825, 1
                %s1830 = sphi %s1741, %s1741
                %s1831 = sphi %s1815, %s1815
              $region249: #{_lambda_.1} parent=245 // loop_header_branch
                %1828 = sbr.rel (%p1826) target = $region253
              $region250: #{_lambda_.1} parent=245 // loop_body
                %v1832 = vld [vmem:[%s1830] sm:%s1823]
                %1833 = vst [vmem:[%s1831] sm:%s1823] %v1832
                %v1834 = vld [vmem:[%s1830 + $0x8] sm:%s1823]
                %1835 = vst [vmem:[%s1831 + $0x18] sm:%s1823] %v1834
                %v1836 = vld [vmem:[%s1830 + $0x10] sm:%s1823]
                %1837 = vst [vmem:[%s1831 + $0x30] sm:%s1823] %v1836
                %v1838 = vld [vmem:[%s1830 + $0x18] sm:%s1823]
                %1839 = vst [vmem:[%s1831 + $0x48] sm:%s1823] %v1838
                %v1840 = vld [vmem:[%s1830 + $0x20] sm:%s1823]
                %1841 = vst [vmem:[%s1831 + $0x60] sm:%s1823] %v1840
                %v1842 = vld [vmem:[%s1830 + $0x28] sm:%s1823]
                %1843 = vst [vmem:[%s1831 + $0x78] sm:%s1823] %v1842
                %v1844 = vld [vmem:[%s1830 + $0x30] sm:%s1823]
                %1845 = vst [vmem:[%s1831 + $0x90] sm:%s1823] %v1844
                %v1846 = vld [vmem:[%s1830 + $0x38] sm:%s1823]
                %1847 = vst [vmem:[%s1831 + $0xa8] sm:%s1823] %v1846
              $region251: #{_lambda_.1} parent=245 // loop_footer
                %s1829 = sadd.s32 1, %s1825
              $region252: #{_lambda_.1} parent=245 // loop_footer_branch
                %1824 = sbr.rel target = $region248
              $region253: #{_lambda_.1} parent=245 // loop_exit
                _
            $region246: #{_lambda_.1} parent=237 // pred_fallthru
              _
          $region238: #{_lambda_.1} parent=233 // pred_fallthru
            _
          %1876 = vnop
        $region234: #{_lambda_.1} parent=179 // pred_fallthru
          _
      $region180: #{_lambda_.1} parent=5 // pred_fallthru
        _
      %p1877 = scmp.le.s32.totalorder 2, %s32
      // Predicated region
      $region269: #{_lambda_.1} parent=5 // pred_check
        %p1878 = pneg %p1877
      $region270: #{_lambda_.1} parent=5 // pred_check_branch
        %1880 = sbr.rel (%p1878) target = $region272
      $region271: #{_lambda_.1} parent=5 // pred_region
        %s1881 = ssub.s32 %s32, 2
        // Predicated region
        $region273: #{_lambda_.1} parent=271 // pred_check
          %p1882 = pneg %p559
        $region274: #{_lambda_.1} parent=271 // pred_check_branch
          %1884 = sbr.rel (%p1882) target = $region276
        $region275: #{_lambda_.1} parent=271 // pred_region
          %s1885 = sand.u32 %s544, 1
          %s1886 = sand.u32 %s544, 1
          %s1887 = smul.addr %s1886, 64
          %s1888 = scalar_lea.vmem [#allocation6], %s1887
        $region276: #{_lambda_.1} parent=271 // pred_fallthru
          _
        // Predicated region
        $region277: #{_lambda_.1} parent=271 // pred_check
          %p1889 = pneg %p585
        $region278: #{_lambda_.1} parent=271 // pred_check_branch
          %1891 = sbr.rel (%p1889) target = $region280
        $region279: #{_lambda_.1} parent=271 // pred_region
          %p1892 = scmp.lt.s32.totalorder %s38, 2
          %s1893 = scalar_select %p1892, %s38, 2
          %s1894 = smul.addr %s1893, 8
          %s1895 = scalar_lea.vmem %s24, %s1894
        $region280: #{_lambda_.1} parent=271 // pred_fallthru
          _
        // Predicated region
        $region281: #{_lambda_.1} parent=271 // pred_check
          %p1896 = pneg %p611
        $region282: #{_lambda_.1} parent=271 // pred_check_branch
          %1898 = sbr.rel (%p1896) target = $region284
        $region283: #{_lambda_.1} parent=271 // pred_region
          %s1899 = sand.u32 %s596, 1
          %s1900 = sand.u32 %s596, 1
          %s1901 = smul.addr %s1900, 64
          %s1902 = scalar_lea.vmem [#allocation7], %s1901
        $region284: #{_lambda_.1} parent=271 // pred_fallthru
          _
      $region272: #{_lambda_.1} parent=5 // pred_fallthru
        _
    $region6: #{_lambda_.1} parent=1 // loop_footer
      %s36 = sadd.s32 1, %s32
    $region7: #{_lambda_.1} parent=1 // loop_footer_branch
      %31 = sbr.rel target = $region3
    $region8: #{_lambda_.1} parent=1 // loop_exit
      _

</llo_original>
